<compile_context>
chip_gen: v5e
topology: v5e:2x2
jax: 0.10.0
libtpu: 0.0.40
codegen_flags: <defaults>
</compile_context>

<pallas_src>
import functools

import jax
import jax.numpy as jnp
from jax.experimental import pallas as pl
from jax.experimental.pallas import tpu as pltpu


def _deepnn_kernel(x_ref,
                   w1_ref, a1_ref, b1_ref,
                   w2_ref, a2_ref, b2_ref,
                   w3_ref, a3_ref, b3_ref,
                   w4_ref, a4_ref, b4_ref,
                   w5_ref, b5_ref,
                   o_ref):
    # ---- Layer 1: fc1(4->512) + bn1 + relu. K=4 is far too shallow for the
    # MXU, so expand it as 4 broadcast FMAs on the VPU (f32).
    x = x_ref[...]                      # (TB, 4) f32
    w1 = w1_ref[...]                    # (4, 512) f32
    h = x[:, 0:1] * w1[0:1, :]
    h = h + x[:, 1:2] * w1[1:2, :]
    h = h + x[:, 2:3] * w1[2:3, :]
    h = h + x[:, 3:4] * w1[3:4, :]
    h = jnp.maximum(h * a1_ref[...] + b1_ref[...], 0.0)     # f32 VPU

    # ---- Layer 2: fc2(512->512) + bn2 + relu (dropout == identity in eval)
    h = jnp.dot(h.astype(jnp.bfloat16), w2_ref[...],
                preferred_element_type=jnp.float32)
    h = jnp.maximum(h * a2_ref[...] + b2_ref[...], 0.0)

    # ---- Layer 3: fc3(512->256) + bn3 + relu
    h = jnp.dot(h.astype(jnp.bfloat16), w3_ref[...],
                preferred_element_type=jnp.float32)
    h = jnp.maximum(h * a3_ref[...] + b3_ref[...], 0.0)

    # ---- Layer 4: fc4(256->128) + bn4 + relu
    h = jnp.dot(h.astype(jnp.bfloat16), w4_ref[...],
                preferred_element_type=jnp.float32)
    h = jnp.maximum(h * a4_ref[...] + b4_ref[...], 0.0)

    # ---- Layer 5: fc5(128->3), zero-padded to 128 output lanes (lane-dense
    # store); no activation.
    h = jnp.dot(h.astype(jnp.bfloat16), w5_ref[...],
                preferred_element_type=jnp.float32)
    o_ref[...] = (h + b5_ref[...]).astype(o_ref.dtype)


def _round_up(n, m):
    return ((n + m - 1) // m) * m


@functools.partial(jax.jit, static_argnames=("block_b",))
def deepnn_forward(x, flat_params, *, block_b=512):
    """x: (B, 4) float32. flat_params: tuple of 14 arrays (see make_params).

    Returns (B, 3) float32, matching DeepNN.forward in eval mode.
    """
    B = x.shape[0]
    # Batch tile: multiple of 8 sublanes, capped at block_b.
    TB = min(block_b, _round_up(B, 8))
    Bp = _round_up(B, TB)
    if Bp != B:
        x = jnp.pad(x, ((0, Bp - B), (0, 0)))
    nb = Bp // TB

    (w1, a1, b1, w2, a2, b2, w3, a3, b3, w4, a4, b4, w5, b5) = flat_params

    x_spec = pl.BlockSpec((TB, 4), lambda i: (i, 0))
    out_spec = pl.BlockSpec((TB, 128), lambda i: (i, 0))

    def resident(arr):
        # Full-array block with constant index_map -> stays in VMEM across steps.
        return pl.BlockSpec(arr.shape, lambda i: (0, 0))

    param_args = (w1, a1, b1, w2, a2, b2, w3, a3, b3, w4, a4, b4, w5, b5)
    in_specs = [x_spec] + [resident(p) for p in param_args]

    out = pl.pallas_call(
        _deepnn_kernel,
        out_shape=jax.ShapeDtypeStruct((Bp, 128), jnp.float32),
        grid=(nb,),
        in_specs=in_specs,
        out_specs=out_spec,
        compiler_params=pltpu.CompilerParams(
            dimension_semantics=("parallel",),
            vmem_limit_bytes=32 * 1024 * 1024,
        ),
    )(x, *param_args)
    return out[:B, :3]


# ----------------------------------------------------------------------------
# Parameter construction (PyTorch-equivalent init + folded BatchNorm).
# ----------------------------------------------------------------------------

def _linear_init(key, in_dim, out_dim):
    """PyTorch nn.Linear default init: U(-1/sqrt(in), 1/sqrt(in))."""
    kw, kb = jax.random.split(key)
    bound = 1.0 / jnp.sqrt(jnp.float32(in_dim))
    w = jax.random.uniform(kw, (out_dim, in_dim), jnp.float32, -bound, bound)
    b = jax.random.uniform(kb, (out_dim,), jnp.float32, -bound, bound)
    return w, b


def _bn_init(key, dim):
    """BatchNorm1d params + (synthetic, deterministic) running stats."""
    kg, kb, km, kv = jax.random.split(key, 4)
    gamma = 1.0 + 0.1 * jax.random.normal(kg, (dim,), jnp.float32)
    beta = 0.1 * jax.random.normal(kb, (dim,), jnp.float32)
    running_mean = 0.1 * jax.random.normal(km, (dim,), jnp.float32)
    running_var = 1.0 + 0.1 * jax.random.uniform(kv, (dim,), jnp.float32)
    return gamma, beta, running_mean, running_var


def _fold_bn(w, b, gamma, beta, mean, var, eps=1e-5):
    """Fold bn(fc(x)) into (x @ W^T) * a + bshift."""
    a = gamma / jnp.sqrt(var + eps)                 # (out,)
    bshift = a * b + (beta - a * mean)              # (out,)
    return w.T, a.reshape(1, -1), bshift.reshape(1, -1)


def make_params(key):
    dims = [(4, 512), (512, 512), (512, 256), (256, 128)]
    keys = jax.random.split(key, 2 * len(dims) + 1)
    flat = []
    for i, (din, dout) in enumerate(dims):
        w, b = _linear_init(keys[2 * i], din, dout)
        gamma, beta, mean, var = _bn_init(keys[2 * i + 1], dout)
        wT, a, bshift = _fold_bn(w, b, gamma, beta, mean, var)
        # Layer 1 weight stays f32 (used on the VPU); layers 2-4 in bf16 (MXU).
        wT = wT if i == 0 else wT.astype(jnp.bfloat16)
        flat += [wT, a, bshift]
    # fc5: transpose and zero-pad 3 -> 128 output lanes (lane-dense stores).
    w5, b5 = _linear_init(keys[-1], 128, 3)
    w5T = jnp.zeros((128, 128), jnp.float32).at[:, :3].set(w5.T)
    b5p = jnp.zeros((1, 128), jnp.float32).at[:, :3].set(b5.reshape(1, -1))
    flat += [w5T.astype(jnp.bfloat16), b5p]
    return tuple(flat)


def deepnn_reference(x, flat_params):
    """Pure-JAX reference mirroring the kernel's dtype choices."""
    (w1, a1, b1, w2, a2, b2, w3, a3, b3, w4, a4, b4, w5, b5) = flat_params
    h = jnp.maximum(x @ w1 * a1 + b1, 0.0)
    h = jnp.dot(h.astype(jnp.bfloat16), w2, preferred_element_type=jnp.float32)
    h = jnp.maximum(h * a2 + b2, 0.0)
    h = jnp.dot(h.astype(jnp.bfloat16), w3, preferred_element_type=jnp.float32)
    h = jnp.maximum(h * a3 + b3, 0.0)
    h = jnp.dot(h.astype(jnp.bfloat16), w4, preferred_element_type=jnp.float32)
    h = jnp.maximum(h * a4 + b4, 0.0)
    h = jnp.dot(h.astype(jnp.bfloat16), w5, preferred_element_type=jnp.float32)
    return (h + b5)[:, :3]


if __name__ == "__main__":
    key = jax.random.PRNGKey(0)
    kx, kp = jax.random.split(key)
    params = make_params(kp)

    # Small demo batch (single grid step).
    B = 8
    x = jax.random.normal(kx, (B, 4), jnp.float32)
    out = jax.block_until_ready(deepnn_forward(x, params))
    ref = deepnn_reference(x, params)
    assert out.shape == (B, 3), out.shape
    assert jnp.allclose(out, ref, atol=2e-3, rtol=2e-3), "mismatch vs reference (B=8)"

    # Exercise multi-tile grid + batch padding path.
    B2 = 200
    x2 = jax.random.normal(kx, (B2, 4), jnp.float32)
    out2 = jax.block_until_ready(deepnn_forward(x2, params, block_b=64))
    ref2 = deepnn_reference(x2, params)
    assert out2.shape == (B2, 3), out2.shape
    assert jnp.allclose(out2, ref2, atol=2e-3, rtol=2e-3), "mismatch vs reference (B=200)"

    print("KERNEL_OK")
</pallas_src>

<mosaic_0001>
module attributes {stable_mosaic.version = 11 : i64} {
  func.func @_deepnn_kernel(%arg0: i32, %arg1: memref<8x4xf32, #tpu.memory_space<vmem>>, %arg2: memref<4x512xf32, #tpu.memory_space<vmem>>, %arg3: memref<1x512xf32, #tpu.memory_space<vmem>>, %arg4: memref<1x512xf32, #tpu.memory_space<vmem>>, %arg5: memref<512x512xbf16, #tpu.memory_space<vmem>>, %arg6: memref<1x512xf32, #tpu.memory_space<vmem>>, %arg7: memref<1x512xf32, #tpu.memory_space<vmem>>, %arg8: memref<512x256xbf16, #tpu.memory_space<vmem>>, %arg9: memref<1x256xf32, #tpu.memory_space<vmem>>, %arg10: memref<1x256xf32, #tpu.memory_space<vmem>>, %arg11: memref<256x128xbf16, #tpu.memory_space<vmem>>, %arg12: memref<1x128xf32, #tpu.memory_space<vmem>>, %arg13: memref<1x128xf32, #tpu.memory_space<vmem>>, %arg14: memref<128x128xbf16, #tpu.memory_space<vmem>>, %arg15: memref<1x128xf32, #tpu.memory_space<vmem>>, %arg16: memref<8x128xf32, #tpu.memory_space<vmem>>) attributes {dimension_semantics = [#tpu.dimension_semantics<parallel>], iteration_bounds = array<i64: 1>, scalar_prefetch = 0 : i64, scratch_operands = 0 : i64, tpu.core_type = #tpu.core_type<tc>, window_params = [{transform_indices = @transform_0, window_bounds = array<i64: 8, 4>}, {pipeline_mode = #tpu.pipeline_mode<synchronous>, transform_indices = @transform_1, window_bounds = array<i64: 4, 512>}, {pipeline_mode = #tpu.pipeline_mode<synchronous>, transform_indices = @transform_2, window_bounds = array<i64: 1, 512>}, {pipeline_mode = #tpu.pipeline_mode<synchronous>, transform_indices = @transform_3, window_bounds = array<i64: 1, 512>}, {pipeline_mode = #tpu.pipeline_mode<synchronous>, transform_indices = @transform_4, window_bounds = array<i64: 512, 512>}, {pipeline_mode = #tpu.pipeline_mode<synchronous>, transform_indices = @transform_5, window_bounds = array<i64: 1, 512>}, {pipeline_mode = #tpu.pipeline_mode<synchronous>, transform_indices = @transform_6, window_bounds = array<i64: 1, 512>}, {pipeline_mode = #tpu.pipeline_mode<synchronous>, transform_indices = @transform_7, window_bounds = array<i64: 512, 256>}, {pipeline_mode = #tpu.pipeline_mode<synchronous>, transform_indices = @transform_8, window_bounds = array<i64: 1, 256>}, {pipeline_mode = #tpu.pipeline_mode<synchronous>, transform_indices = @transform_9, window_bounds = array<i64: 1, 256>}, {pipeline_mode = #tpu.pipeline_mode<synchronous>, transform_indices = @transform_10, window_bounds = array<i64: 256, 128>}, {pipeline_mode = #tpu.pipeline_mode<synchronous>, transform_indices = @transform_11, window_bounds = array<i64: 1, 128>}, {pipeline_mode = #tpu.pipeline_mode<synchronous>, transform_indices = @transform_12, window_bounds = array<i64: 1, 128>}, {pipeline_mode = #tpu.pipeline_mode<synchronous>, transform_indices = @transform_13, window_bounds = array<i64: 128, 128>}, {pipeline_mode = #tpu.pipeline_mode<synchronous>, transform_indices = @transform_14, window_bounds = array<i64: 1, 128>}, {transform_indices = @transform_15, window_bounds = array<i64: 8, 128>}]} {
    %c0 = arith.constant 0 : index
    %c0_0 = arith.constant 0 : index
    %0 = vector.load %arg1[%c0, %c0_0] : memref<8x4xf32, #tpu.memory_space<vmem>>, vector<8x4xf32>
    %c0_1 = arith.constant 0 : index
    %c0_2 = arith.constant 0 : index
    %1 = vector.load %arg2[%c0_1, %c0_2] : memref<4x512xf32, #tpu.memory_space<vmem>>, vector<4x512xf32>
    %2 = vector.extract_strided_slice %0 {offsets = [0, 0], sizes = [8, 1], strides = [1, 1]} : vector<8x4xf32> to vector<8x1xf32>
    %3 = vector.extract_strided_slice %1 {offsets = [0, 0], sizes = [1, 512], strides = [1, 1]} : vector<4x512xf32> to vector<1x512xf32>
    %4 = vector.broadcast %2 : vector<8x1xf32> to vector<8x512xf32>
    %5 = vector.broadcast %3 : vector<1x512xf32> to vector<8x512xf32>
    %6 = arith.mulf %4, %5 : vector<8x512xf32>
    %7 = vector.extract_strided_slice %0 {offsets = [0, 1], sizes = [8, 1], strides = [1, 1]} : vector<8x4xf32> to vector<8x1xf32>
    %8 = vector.extract_strided_slice %1 {offsets = [1, 0], sizes = [1, 512], strides = [1, 1]} : vector<4x512xf32> to vector<1x512xf32>
    %9 = vector.broadcast %7 : vector<8x1xf32> to vector<8x512xf32>
    %10 = vector.broadcast %8 : vector<1x512xf32> to vector<8x512xf32>
    %11 = arith.mulf %9, %10 : vector<8x512xf32>
    %12 = arith.addf %6, %11 : vector<8x512xf32>
    %13 = vector.extract_strided_slice %0 {offsets = [0, 2], sizes = [8, 1], strides = [1, 1]} : vector<8x4xf32> to vector<8x1xf32>
    %14 = vector.extract_strided_slice %1 {offsets = [2, 0], sizes = [1, 512], strides = [1, 1]} : vector<4x512xf32> to vector<1x512xf32>
    %15 = vector.broadcast %13 : vector<8x1xf32> to vector<8x512xf32>
    %16 = vector.broadcast %14 : vector<1x512xf32> to vector<8x512xf32>
    %17 = arith.mulf %15, %16 : vector<8x512xf32>
    %18 = arith.addf %12, %17 : vector<8x512xf32>
    %19 = vector.extract_strided_slice %0 {offsets = [0, 3], sizes = [8, 1], strides = [1, 1]} : vector<8x4xf32> to vector<8x1xf32>
    %20 = vector.extract_strided_slice %1 {offsets = [3, 0], sizes = [1, 512], strides = [1, 1]} : vector<4x512xf32> to vector<1x512xf32>
    %21 = vector.broadcast %19 : vector<8x1xf32> to vector<8x512xf32>
    %22 = vector.broadcast %20 : vector<1x512xf32> to vector<8x512xf32>
    %23 = arith.mulf %21, %22 : vector<8x512xf32>
    %24 = arith.addf %18, %23 : vector<8x512xf32>
    %c0_3 = arith.constant 0 : index
    %c0_4 = arith.constant 0 : index
    %25 = vector.load %arg3[%c0_3, %c0_4] : memref<1x512xf32, #tpu.memory_space<vmem>>, vector<1x512xf32>
    %26 = vector.broadcast %25 : vector<1x512xf32> to vector<8x512xf32>
    %27 = arith.mulf %24, %26 : vector<8x512xf32>
    %c0_5 = arith.constant 0 : index
    %c0_6 = arith.constant 0 : index
    %28 = vector.load %arg4[%c0_5, %c0_6] : memref<1x512xf32, #tpu.memory_space<vmem>>, vector<1x512xf32>
    %29 = vector.broadcast %28 : vector<1x512xf32> to vector<8x512xf32>
    %30 = arith.addf %27, %29 : vector<8x512xf32>
    %cst = arith.constant 0.000000e+00 : f32
    %31 = vector.broadcast %cst : f32 to vector<8x512xf32>
    %32 = arith.maximumf %30, %31 : vector<8x512xf32>
    %33 = arith.truncf %32 : vector<8x512xf32> to vector<8x512xbf16>
    %c0_7 = arith.constant 0 : index
    %c0_8 = arith.constant 0 : index
    %34 = vector.load %arg5[%c0_7, %c0_8] : memref<512x512xbf16, #tpu.memory_space<vmem>>, vector<512x512xbf16>
    %cst_9 = arith.constant dense<0.000000e+00> : vector<8x512xf32>
    %35 = tpu.matmul %33, %34, %cst_9 {dimension_numbers = #tpu.dot_dimension_numbers<[1], [0], [0], [1], [0, 0, 1, 1], [], []>} : vector<8x512xbf16>, vector<512x512xbf16>, vector<8x512xf32> -> vector<8x512xf32>
    %c0_10 = arith.constant 0 : index
    %c0_11 = arith.constant 0 : index
    %36 = vector.load %arg6[%c0_10, %c0_11] : memref<1x512xf32, #tpu.memory_space<vmem>>, vector<1x512xf32>
    %37 = vector.broadcast %36 : vector<1x512xf32> to vector<8x512xf32>
    %38 = arith.mulf %35, %37 : vector<8x512xf32>
    %c0_12 = arith.constant 0 : index
    %c0_13 = arith.constant 0 : index
    %39 = vector.load %arg7[%c0_12, %c0_13] : memref<1x512xf32, #tpu.memory_space<vmem>>, vector<1x512xf32>
    %40 = vector.broadcast %39 : vector<1x512xf32> to vector<8x512xf32>
    %41 = arith.addf %38, %40 : vector<8x512xf32>
    %cst_14 = arith.constant 0.000000e+00 : f32
    %42 = vector.broadcast %cst_14 : f32 to vector<8x512xf32>
    %43 = arith.maximumf %41, %42 : vector<8x512xf32>
    %44 = arith.truncf %43 : vector<8x512xf32> to vector<8x512xbf16>
    %c0_15 = arith.constant 0 : index
    %c0_16 = arith.constant 0 : index
    %45 = vector.load %arg8[%c0_15, %c0_16] : memref<512x256xbf16, #tpu.memory_space<vmem>>, vector<512x256xbf16>
    %cst_17 = arith.constant dense<0.000000e+00> : vector<8x256xf32>
    %46 = tpu.matmul %44, %45, %cst_17 {dimension_numbers = #tpu.dot_dimension_numbers<[1], [0], [0], [1], [0, 0, 1, 1], [], []>} : vector<8x512xbf16>, vector<512x256xbf16>, vector<8x256xf32> -> vector<8x256xf32>
    %c0_18 = arith.constant 0 : index
    %c0_19 = arith.constant 0 : index
    %47 = vector.load %arg9[%c0_18, %c0_19] : memref<1x256xf32, #tpu.memory_space<vmem>>, vector<1x256xf32>
    %48 = vector.broadcast %47 : vector<1x256xf32> to vector<8x256xf32>
    %49 = arith.mulf %46, %48 : vector<8x256xf32>
    %c0_20 = arith.constant 0 : index
    %c0_21 = arith.constant 0 : index
    %50 = vector.load %arg10[%c0_20, %c0_21] : memref<1x256xf32, #tpu.memory_space<vmem>>, vector<1x256xf32>
    %51 = vector.broadcast %50 : vector<1x256xf32> to vector<8x256xf32>
    %52 = arith.addf %49, %51 : vector<8x256xf32>
    %cst_22 = arith.constant 0.000000e+00 : f32
    %53 = vector.broadcast %cst_22 : f32 to vector<8x256xf32>
    %54 = arith.maximumf %52, %53 : vector<8x256xf32>
    %55 = arith.truncf %54 : vector<8x256xf32> to vector<8x256xbf16>
    %c0_23 = arith.constant 0 : index
    %c0_24 = arith.constant 0 : index
    %56 = vector.load %arg11[%c0_23, %c0_24] : memref<256x128xbf16, #tpu.memory_space<vmem>>, vector<256x128xbf16>
    %cst_25 = arith.constant dense<0.000000e+00> : vector<8x128xf32>
    %57 = tpu.matmul %55, %56, %cst_25 {dimension_numbers = #tpu.dot_dimension_numbers<[1], [0], [0], [1], [0, 0, 1, 1], [], []>} : vector<8x256xbf16>, vector<256x128xbf16>, vector<8x128xf32> -> vector<8x128xf32>
    %c0_26 = arith.constant 0 : index
    %c0_27 = arith.constant 0 : index
    %58 = vector.load %arg12[%c0_26, %c0_27] : memref<1x128xf32, #tpu.memory_space<vmem>>, vector<1x128xf32>
    %59 = vector.broadcast %58 : vector<1x128xf32> to vector<8x128xf32>
    %60 = arith.mulf %57, %59 : vector<8x128xf32>
    %c0_28 = arith.constant 0 : index
    %c0_29 = arith.constant 0 : index
    %61 = vector.load %arg13[%c0_28, %c0_29] : memref<1x128xf32, #tpu.memory_space<vmem>>, vector<1x128xf32>
    %62 = vector.broadcast %61 : vector<1x128xf32> to vector<8x128xf32>
    %63 = arith.addf %60, %62 : vector<8x128xf32>
    %cst_30 = arith.constant 0.000000e+00 : f32
    %64 = vector.broadcast %cst_30 : f32 to vector<8x128xf32>
    %65 = arith.maximumf %63, %64 : vector<8x128xf32>
    %66 = arith.truncf %65 : vector<8x128xf32> to vector<8x128xbf16>
    %c0_31 = arith.constant 0 : index
    %c0_32 = arith.constant 0 : index
    %67 = vector.load %arg14[%c0_31, %c0_32] : memref<128x128xbf16, #tpu.memory_space<vmem>>, vector<128x128xbf16>
    %cst_33 = arith.constant dense<0.000000e+00> : vector<8x128xf32>
    %68 = tpu.matmul %66, %67, %cst_33 {dimension_numbers = #tpu.dot_dimension_numbers<[1], [0], [0], [1], [0, 0, 1, 1], [], []>} : vector<8x128xbf16>, vector<128x128xbf16>, vector<8x128xf32> -> vector<8x128xf32>
    %c0_34 = arith.constant 0 : index
    %c0_35 = arith.constant 0 : index
    %69 = vector.load %arg15[%c0_34, %c0_35] : memref<1x128xf32, #tpu.memory_space<vmem>>, vector<1x128xf32>
    %70 = vector.broadcast %69 : vector<1x128xf32> to vector<8x128xf32>
    %71 = arith.addf %68, %70 : vector<8x128xf32>
    %c0_36 = arith.constant 0 : index
    %c0_37 = arith.constant 0 : index
    %72 = vector.load %arg16[%c0_36, %c0_37] : memref<8x128xf32, #tpu.memory_space<vmem>>, vector<8x128xf32>
    tpu.vector_store %arg16[%c0_36, %c0_37], %71 {strides = array<i32>} : memref<8x128xf32, #tpu.memory_space<vmem>>, vector<8x128xf32>,
    return
  }
  func.func @transform_0(%arg0: i32) -> (i32, i32) {
    %c0_i32 = arith.constant 0 : i32
    %c0_i32_0 = arith.constant 0 : i32
    return %arg0, %c0_i32 : i32, i32
  }
  func.func @transform_1(%arg0: i32) -> (i32, i32) {
    %c0_i32 = arith.constant 0 : i32
    %c0_i32_0 = arith.constant 0 : i32
    %c0_i32_1 = arith.constant 0 : i32
    return %c0_i32, %c0_i32_0 : i32, i32
  }
  func.func @transform_2(%arg0: i32) -> (i32, i32) {
    %c0_i32 = arith.constant 0 : i32
    %c0_i32_0 = arith.constant 0 : i32
    %c0_i32_1 = arith.constant 0 : i32
    return %c0_i32, %c0_i32_0 : i32, i32
  }
  func.func @transform_3(%arg0: i32) -> (i32, i32) {
    %c0_i32 = arith.constant 0 : i32
    %c0_i32_0 = arith.constant 0 : i32
    %c0_i32_1 = arith.constant 0 : i32
    return %c0_i32, %c0_i32_0 : i32, i32
  }
  func.func @transform_4(%arg0: i32) -> (i32, i32) {
    %c0_i32 = arith.constant 0 : i32
    %c0_i32_0 = arith.constant 0 : i32
    %c0_i32_1 = arith.constant 0 : i32
    return %c0_i32, %c0_i32_0 : i32, i32
  }
  func.func @transform_5(%arg0: i32) -> (i32, i32) {
    %c0_i32 = arith.constant 0 : i32
    %c0_i32_0 = arith.constant 0 : i32
    %c0_i32_1 = arith.constant 0 : i32
    return %c0_i32, %c0_i32_0 : i32, i32
  }
  func.func @transform_6(%arg0: i32) -> (i32, i32) {
    %c0_i32 = arith.constant 0 : i32
    %c0_i32_0 = arith.constant 0 : i32
    %c0_i32_1 = arith.constant 0 : i32
    return %c0_i32, %c0_i32_0 : i32, i32
  }
  func.func @transform_7(%arg0: i32) -> (i32, i32) {
    %c0_i32 = arith.constant 0 : i32
    %c0_i32_0 = arith.constant 0 : i32
    %c0_i32_1 = arith.constant 0 : i32
    return %c0_i32, %c0_i32_0 : i32, i32
  }
  func.func @transform_8(%arg0: i32) -> (i32, i32) {
    %c0_i32 = arith.constant 0 : i32
    %c0_i32_0 = arith.constant 0 : i32
    %c0_i32_1 = arith.constant 0 : i32
    return %c0_i32, %c0_i32_0 : i32, i32
  }
  func.func @transform_9(%arg0: i32) -> (i32, i32) {
    %c0_i32 = arith.constant 0 : i32
    %c0_i32_0 = arith.constant 0 : i32
    %c0_i32_1 = arith.constant 0 : i32
    return %c0_i32, %c0_i32_0 : i32, i32
  }
  func.func @transform_10(%arg0: i32) -> (i32, i32) {
    %c0_i32 = arith.constant 0 : i32
    %c0_i32_0 = arith.constant 0 : i32
    %c0_i32_1 = arith.constant 0 : i32
    return %c0_i32, %c0_i32_0 : i32, i32
  }
  func.func @transform_11(%arg0: i32) -> (i32, i32) {
    %c0_i32 = arith.constant 0 : i32
    %c0_i32_0 = arith.constant 0 : i32
    %c0_i32_1 = arith.constant 0 : i32
    return %c0_i32, %c0_i32_0 : i32, i32
  }
  func.func @transform_12(%arg0: i32) -> (i32, i32) {
    %c0_i32 = arith.constant 0 : i32
    %c0_i32_0 = arith.constant 0 : i32
    %c0_i32_1 = arith.constant 0 : i32
    return %c0_i32, %c0_i32_0 : i32, i32
  }
  func.func @transform_13(%arg0: i32) -> (i32, i32) {
    %c0_i32 = arith.constant 0 : i32
    %c0_i32_0 = arith.constant 0 : i32
    %c0_i32_1 = arith.constant 0 : i32
    return %c0_i32, %c0_i32_0 : i32, i32
  }
  func.func @transform_14(%arg0: i32) -> (i32, i32) {
    %c0_i32 = arith.constant 0 : i32
    %c0_i32_0 = arith.constant 0 : i32
    %c0_i32_1 = arith.constant 0 : i32
    return %c0_i32, %c0_i32_0 : i32, i32
  }
  func.func @transform_15(%arg0: i32) -> (i32, i32) {
    %c0_i32 = arith.constant 0 : i32
    %c0_i32_0 = arith.constant 0 : i32
    return %arg0, %c0_i32 : i32, i32
  }
}

</mosaic_0001>

<llo_original>
// kernel: deepnn_forward.1
$region0: #{deepnn_forward.1}
  #allocation0 [shape = 'u32[]', space=smem, size = 0x4, offset = 0x4, fixed_abs, tag = 'smem constant byte address 0x4 - core index']
  #allocation1 [shape = 'u32[72,128]{1,0:T(1,128)}', space=vmem, size = 0x9000, scoped, tag = 'internal scratch']
  %s0 = inlined_call_operand.vmem [shape: f32[8,4], index: 0, kind: input, shape index: {}]
  %s1 = inlined_call_operand.hbm [shape: f32[4,512], index: 1, kind: input, shape index: {}]
  %s2 = inlined_call_operand.vmem [shape: f32[1,512], index: 2, kind: input, shape index: {}]
  %s3 = inlined_call_operand.vmem [shape: f32[1,512], index: 3, kind: input, shape index: {}]
  %s4 = inlined_call_operand.hbm [shape: bf16[512,512], index: 4, kind: input, shape index: {}]
  %s5 = inlined_call_operand.vmem [shape: f32[1,512], index: 5, kind: input, shape index: {}]
  %s6 = inlined_call_operand.vmem [shape: f32[1,512], index: 6, kind: input, shape index: {}]
  %s7 = inlined_call_operand.hbm [shape: bf16[512,256], index: 7, kind: input, shape index: {}]
  %s8 = inlined_call_operand.vmem [shape: f32[1,256], index: 8, kind: input, shape index: {}]
  %s9 = inlined_call_operand.vmem [shape: f32[1,256], index: 9, kind: input, shape index: {}]
  %s10 = inlined_call_operand.hbm [shape: bf16[256,128], index: 10, kind: input, shape index: {}]
  %s11 = inlined_call_operand.vmem [shape: f32[1,128], index: 11, kind: input, shape index: {}]
  %s12 = inlined_call_operand.vmem [shape: f32[1,128], index: 12, kind: input, shape index: {}]
  %s13 = inlined_call_operand.hbm [shape: bf16[128,128], index: 13, kind: input, shape index: {}]
  %s14 = inlined_call_operand.vmem [shape: f32[1,128], index: 14, kind: input, shape index: {}]
  %s15 = inlined_call_operand.vmem [shape: f32[8,128], index: 15, kind: output, shape index: {}]
  %s16 = sld [smem:[#allocation0]]
  $region90: #{deepnn_forward.1} parent=0
    _
  %s18 = ssub.s32 1, %s16
  %s19 = scalar_select 0, %s18, %s16
  $region1: #{deepnn_forward.1} parent=0
    #allocation2 [shape = 'u8[8192]{0}', space=vmem, size = 0x2000, scoped, tag = 'input window, operand 1, single buffered']
    #allocation3 [shape = 's32[1]{0}', space=sflag, size = 0x4, scoped, tag = 'scoped memory for deepnn_forward.1']
    #allocation4 [shape = 'u8[524288]{0}', space=vmem, size = 0x80000, scoped, tag = 'input window, operand 4, single buffered']
    #allocation5 [shape = 's32[1]{0}', space=sflag, size = 0x4, scoped, tag = 'scoped memory for deepnn_forward.1']
    #allocation6 [shape = 'u8[262144]{0}', space=vmem, size = 0x40000, scoped, tag = 'input window, operand 7, single buffered']
    #allocation7 [shape = 'u8[65536]{0}', space=vmem, size = 0x10000, scoped, tag = 'input window, operand 10, single buffered']
    #allocation8 [shape = 's32[1]{0}', space=sflag, size = 0x4, scoped, tag = 'scoped memory for deepnn_forward.1']
    #allocation9 [shape = 'u8[32768]{0}', space=vmem, size = 0x8000, scoped, tag = 'input window, operand 13, single buffered']
    %20 = vsyncpa [#allocation3], 0
    %21 = vsyncpa [#allocation5], 0
    %22 = vsyncpa [#allocation8], 0
    // Predicated region
    $region2: #{deepnn_forward.1} parent=1 // pred_check
      _
    $region3: #{deepnn_forward.1} parent=1 // pred_check_branch
      %24 = sbr.rel (0) target = $region5
    $region4: #{deepnn_forward.1} parent=1 // pred_region
      _
    $region5: #{deepnn_forward.1} parent=1 // pred_fallthru
      _
    // Predicated region
    $region6: #{deepnn_forward.1} parent=1 // pred_check
      _
    $region7: #{deepnn_forward.1} parent=1 // pred_check_branch
      %26 = sbr.rel (0) target = $region9
    $region8: #{deepnn_forward.1} parent=1 // pred_region
      %28 = vsyncadd [#allocation3], 0
      %s30 = sshll.u32 %s1, 4
      %s31 = int_to_ptr.hbm [resolvable:$true] %s30
      %s32 = sshll.u32 [#allocation2], 4
      %s33 = int_to_ptr.vmem [resolvable:$true] %s32
      %35 = dma.hbm_to_vmem [thread:$0]  %s31, 256, %s33, [#allocation3]
    $region9: #{deepnn_forward.1} parent=1 // pred_fallthru
      _
    // Predicated region
    $region10: #{deepnn_forward.1} parent=1 // pred_check
      _
    $region11: #{deepnn_forward.1} parent=1 // pred_check_branch
      %37 = sbr.rel (0) target = $region13
    $region12: #{deepnn_forward.1} parent=1 // pred_region
      _
    $region13: #{deepnn_forward.1} parent=1 // pred_fallthru
      _
    // Predicated region
    $region14: #{deepnn_forward.1} parent=1 // pred_check
      _
    $region15: #{deepnn_forward.1} parent=1 // pred_check_branch
      %39 = sbr.rel (0) target = $region17
    $region16: #{deepnn_forward.1} parent=1 // pred_region
      _
    $region17: #{deepnn_forward.1} parent=1 // pred_fallthru
      _
    // Predicated region
    $region18: #{deepnn_forward.1} parent=1 // pred_check
      _
    $region19: #{deepnn_forward.1} parent=1 // pred_check_branch
      %41 = sbr.rel (0) target = $region21
    $region20: #{deepnn_forward.1} parent=1 // pred_region
      %43 = vsyncadd [#allocation5], 0
      %s44 = sshll.u32 %s4, 4
      %s45 = int_to_ptr.hbm [resolvable:$true] %s44
      %s46 = sshll.u32 [#allocation4], 4
      %s47 = int_to_ptr.vmem [resolvable:$true] %s46
      %52 = dma.hbm_to_vmem [thread:$0]  %s45, 16384, %s47, [#allocation5], 256, 256, 16
    $region21: #{deepnn_forward.1} parent=1 // pred_fallthru
      _
    // Predicated region
    $region22: #{deepnn_forward.1} parent=1 // pred_check
      _
    $region23: #{deepnn_forward.1} parent=1 // pred_check_branch
      %54 = sbr.rel (0) target = $region25
    $region24: #{deepnn_forward.1} parent=1 // pred_region
      _
    $region25: #{deepnn_forward.1} parent=1 // pred_fallthru
      _
    // Predicated region
    $region26: #{deepnn_forward.1} parent=1 // pred_check
      _
    $region27: #{deepnn_forward.1} parent=1 // pred_check_branch
      %56 = sbr.rel (0) target = $region29
    $region28: #{deepnn_forward.1} parent=1 // pred_region
      _
    $region29: #{deepnn_forward.1} parent=1 // pred_fallthru
      _
    // Predicated region
    $region30: #{deepnn_forward.1} parent=1 // pred_check
      _
    $region31: #{deepnn_forward.1} parent=1 // pred_check_branch
      %58 = sbr.rel (0) target = $region33
    $region32: #{deepnn_forward.1} parent=1 // pred_region
      %60 = vsyncadd [#allocation5], 0
      %s61 = sshll.u32 %s7, 4
      %s62 = int_to_ptr.hbm [resolvable:$true] %s61
      %s63 = sshll.u32 [#allocation6], 4
      %s64 = int_to_ptr.vmem [resolvable:$true] %s63
      %69 = dma.hbm_to_vmem [thread:$0]  %s62, 8192, %s64, [#allocation5], 128, 128, 8
    $region33: #{deepnn_forward.1} parent=1 // pred_fallthru
      _
    // Predicated region
    $region34: #{deepnn_forward.1} parent=1 // pred_check
      _
    $region35: #{deepnn_forward.1} parent=1 // pred_check_branch
      %71 = sbr.rel (0) target = $region37
    $region36: #{deepnn_forward.1} parent=1 // pred_region
      _
    $region37: #{deepnn_forward.1} parent=1 // pred_fallthru
      _
    // Predicated region
    $region38: #{deepnn_forward.1} parent=1 // pred_check
      _
    $region39: #{deepnn_forward.1} parent=1 // pred_check_branch
      %73 = sbr.rel (0) target = $region41
    $region40: #{deepnn_forward.1} parent=1 // pred_region
      _
    $region41: #{deepnn_forward.1} parent=1 // pred_fallthru
      _
    // Predicated region
    $region42: #{deepnn_forward.1} parent=1 // pred_check
      _
    $region43: #{deepnn_forward.1} parent=1 // pred_check_branch
      %75 = sbr.rel (0) target = $region45
    $region44: #{deepnn_forward.1} parent=1 // pred_region
      %77 = vsyncadd [#allocation8], 0
      %s78 = sshll.u32 %s10, 4
      %s79 = int_to_ptr.hbm [resolvable:$true] %s78
      %s80 = sshll.u32 [#allocation7], 4
      %s81 = int_to_ptr.vmem [resolvable:$true] %s80
      %86 = dma.hbm_to_vmem [thread:$0]  %s79, 2048, %s81, [#allocation8], 64, 64, 4
    $region45: #{deepnn_forward.1} parent=1 // pred_fallthru
      _
    // Predicated region
    $region46: #{deepnn_forward.1} parent=1 // pred_check
      _
    $region47: #{deepnn_forward.1} parent=1 // pred_check_branch
      %88 = sbr.rel (0) target = $region49
    $region48: #{deepnn_forward.1} parent=1 // pred_region
      _
    $region49: #{deepnn_forward.1} parent=1 // pred_fallthru
      _
    // Predicated region
    $region50: #{deepnn_forward.1} parent=1 // pred_check
      _
    $region51: #{deepnn_forward.1} parent=1 // pred_check_branch
      %90 = sbr.rel (0) target = $region53
    $region52: #{deepnn_forward.1} parent=1 // pred_region
      _
    $region53: #{deepnn_forward.1} parent=1 // pred_fallthru
      _
    // Predicated region
    $region54: #{deepnn_forward.1} parent=1 // pred_check
      _
    $region55: #{deepnn_forward.1} parent=1 // pred_check_branch
      %92 = sbr.rel (0) target = $region57
    $region56: #{deepnn_forward.1} parent=1 // pred_region
      %94 = vsyncadd [#allocation8], 0
      %s95 = sshll.u32 %s13, 4
      %s96 = int_to_ptr.hbm [resolvable:$true] %s95
      %s97 = sshll.u32 [#allocation9], 4
      %s98 = int_to_ptr.vmem [resolvable:$true] %s97
      %103 = dma.hbm_to_vmem [thread:$0]  %s96, 1024, %s98, [#allocation8], 64, 64, 4
    $region57: #{deepnn_forward.1} parent=1 // pred_fallthru
      _
    // Predicated region
    $region58: #{deepnn_forward.1} parent=1 // pred_check
      _
    $region59: #{deepnn_forward.1} parent=1 // pred_check_branch
      %105 = sbr.rel (0) target = $region61
    $region60: #{deepnn_forward.1} parent=1 // pred_region
      _
    $region61: #{deepnn_forward.1} parent=1 // pred_fallthru
      _
    // Predicated region
    $region62: #{deepnn_forward.1} parent=1 // pred_check
      _
    $region63: #{deepnn_forward.1} parent=1 // pred_check_branch
      %107 = sbr.rel (0) target = $region65
    $region64: #{deepnn_forward.1} parent=1 // pred_region
      %109 = dma.done [#allocation3], 256
    $region65: #{deepnn_forward.1} parent=1 // pred_fallthru
      _
    // Predicated region
    $region66: #{deepnn_forward.1} parent=1 // pred_check
      _
    $region67: #{deepnn_forward.1} parent=1 // pred_check_branch
      %111 = sbr.rel (0) target = $region69
    $region68: #{deepnn_forward.1} parent=1 // pred_region
      %113 = dma.done [#allocation5], 16384
    $region69: #{deepnn_forward.1} parent=1 // pred_fallthru
      _
    // Predicated region
    $region70: #{deepnn_forward.1} parent=1 // pred_check
      _
    $region71: #{deepnn_forward.1} parent=1 // pred_check_branch
      %115 = sbr.rel (0) target = $region73
    $region72: #{deepnn_forward.1} parent=1 // pred_region
      %117 = dma.done [#allocation5], 8192
    $region73: #{deepnn_forward.1} parent=1 // pred_fallthru
      _
    // Predicated region
    $region74: #{deepnn_forward.1} parent=1 // pred_check
      _
    $region75: #{deepnn_forward.1} parent=1 // pred_check_branch
      %119 = sbr.rel (0) target = $region77
    $region76: #{deepnn_forward.1} parent=1 // pred_region
      %121 = dma.done [#allocation8], 2048
    $region77: #{deepnn_forward.1} parent=1 // pred_fallthru
      _
    // Predicated region
    $region78: #{deepnn_forward.1} parent=1 // pred_check
      _
    $region79: #{deepnn_forward.1} parent=1 // pred_check_branch
      %123 = sbr.rel (0) target = $region81
    $region80: #{deepnn_forward.1} parent=1 // pred_region
      %125 = dma.done [#allocation8], 1024
    $region81: #{deepnn_forward.1} parent=1 // pred_fallthru
      _
    %v126 = vld [vmem:[%s0] sm:$0xff]
    %v127 = vld [vmem:[#allocation2] sm:$0xff]
    %v128 = vld [vmem:[#allocation2 + $0x8] sm:$0xff]
    %130 = vset.pattern.permute.xlu0 0
    %131 = vperm.xlu0 %130, %v126
    %v132 = vpop.permute.xlu0 %131
    %v136 = vperm.slane %v127, 0
    %v137 = vperm.slane %v127, 4
    %v138 = vperm.slane %v128, 0
    %v139 = vperm.slane %v128, 4
    %v144 = vperm.slane %v136, 0
    %v145 = vperm.slane %v137, 0
    %v146 = vperm.slane %v138, 0
    %v147 = vperm.slane %v139, 0
    %v148 = vmul.f32 %v132, %v144
    %v149 = vmul.f32 %v132, %v145
    %v150 = vmul.f32 %v132, %v146
    %v151 = vmul.f32 %v132, %v147
    %152 = vset.pattern.permute.xlu0 1
    %153 = vperm.xlu0 %152, %v126
    %v154 = vpop.permute.xlu0 %153
    %v156 = vperm.slane %v127, 1
    %v157 = vperm.slane %v127, 5
    %v158 = vperm.slane %v128, 1
    %v159 = vperm.slane %v128, 5
    %v164 = vperm.slane %v156, 1
    %v165 = vperm.slane %v157, 1
    %v166 = vperm.slane %v158, 1
    %v167 = vperm.slane %v159, 1
    %v168 = vmul.f32 %v154, %v164
    %v169 = vmul.f32 %v154, %v165
    %v170 = vmul.f32 %v154, %v166
    %v171 = vmul.f32 %v154, %v167
    %v172 = vadd.f32 %v148, %v168
    %v173 = vadd.f32 %v149, %v169
    %v174 = vadd.f32 %v150, %v170
    %v175 = vadd.f32 %v151, %v171
    %176 = vset.pattern.permute.xlu0 2
    %177 = vperm.xlu0 %176, %v126
    %v178 = vpop.permute.xlu0 %177
    %v180 = vperm.slane %v127, 2
    %v181 = vperm.slane %v127, 6
    %v182 = vperm.slane %v128, 2
    %v183 = vperm.slane %v128, 6
    %v188 = vperm.slane %v180, 2
    %v189 = vperm.slane %v181, 2
    %v190 = vperm.slane %v182, 2
    %v191 = vperm.slane %v183, 2
    %v192 = vmul.f32 %v178, %v188
    %v193 = vmul.f32 %v178, %v189
    %v194 = vmul.f32 %v178, %v190
    %v195 = vmul.f32 %v178, %v191
    %v196 = vadd.f32 %v172, %v192
    %v197 = vadd.f32 %v173, %v193
    %v198 = vadd.f32 %v174, %v194
    %v199 = vadd.f32 %v175, %v195
    %200 = vset.pattern.permute.xlu0 3
    %201 = vperm.xlu0 %200, %v126
    %v202 = vpop.permute.xlu0 %201
    %v204 = vperm.slane %v127, 3
    %v205 = vperm.slane %v127, 7
    %v206 = vperm.slane %v128, 3
    %v207 = vperm.slane %v128, 7
    %v212 = vperm.slane %v204, 3
    %v213 = vperm.slane %v205, 3
    %v214 = vperm.slane %v206, 3
    %v215 = vperm.slane %v207, 3
    %v216 = vmul.f32 %v202, %v212
    %v217 = vmul.f32 %v202, %v213
    %v218 = vmul.f32 %v202, %v214
    %v219 = vmul.f32 %v202, %v215
    %v220 = vadd.f32 %v196, %v216
    %v221 = vadd.f32 %v197, %v217
    %v222 = vadd.f32 %v198, %v218
    %v223 = vadd.f32 %v199, %v219
    %v224 = vld [vmem:[%s2] sm:$0xf]
    %v226 = vperm.slane %v224, 0
    %v227 = vperm.slane %v224, 1
    %v228 = vperm.slane %v224, 2
    %v229 = vperm.slane %v224, 3
    %v234 = vmul.f32 %v220, %v226
    %v235 = vmul.f32 %v221, %v227
    %v236 = vmul.f32 %v222, %v228
    %v237 = vmul.f32 %v223, %v229
    %v238 = vld [vmem:[%s3] sm:$0xf]
    %v240 = vperm.slane %v238, 0
    %v241 = vperm.slane %v238, 1
    %v242 = vperm.slane %v238, 2
    %v243 = vperm.slane %v238, 3
    %v248 = vadd.f32 %v234, %v240
    %v249 = vadd.f32 %v235, %v241
    %v250 = vadd.f32 %v236, %v242
    %v251 = vadd.f32 %v237, %v243
    %v252 = vmax.f32 %v248, 0.0
    %v253 = vmax.f32 %v249, 0.0
    %v254 = vmax.f32 %v250, 0.0
    %v255 = vmax.f32 %v251, 0.0
    %v256 = vpack.c.bf16 %v252, %v252
    %v257 = vpack.c.bf16 %v253, %v253
    %v258 = vpack.c.bf16 %v254, %v254
    %v259 = vpack.c.bf16 %v255, %v255
    %v260 = vld [vmem:[#allocation4] sm:$0xff]
    %v261 = vld [vmem:[#allocation4 + $0x8] sm:$0xff]
    %v262 = vld [vmem:[#allocation4 + $0x10] sm:$0xff]
    %v263 = vld [vmem:[#allocation4 + $0x18] sm:$0xff]
    %v264 = vld [vmem:[#allocation4 + $0x20] sm:$0xff]
    %v265 = vld [vmem:[#allocation4 + $0x28] sm:$0xff]
    %v266 = vld [vmem:[#allocation4 + $0x30] sm:$0xff]
    %v267 = vld [vmem:[#allocation4 + $0x38] sm:$0xff]
    %v268 = vld [vmem:[#allocation4 + $0x40] sm:$0xff]
    %v269 = vld [vmem:[#allocation4 + $0x48] sm:$0xff]
    %v270 = vld [vmem:[#allocation4 + $0x50] sm:$0xff]
    %v271 = vld [vmem:[#allocation4 + $0x58] sm:$0xff]
    %v272 = vld [vmem:[#allocation4 + $0x60] sm:$0xff]
    %v273 = vld [vmem:[#allocation4 + $0x68] sm:$0xff]
    %v274 = vld [vmem:[#allocation4 + $0x70] sm:$0xff]
    %v275 = vld [vmem:[#allocation4 + $0x78] sm:$0xff]
    %v276 = vld [vmem:[#allocation4 + $0x80] sm:$0xff]
    %v277 = vld [vmem:[#allocation4 + $0x88] sm:$0xff]
    %v278 = vld [vmem:[#allocation4 + $0x90] sm:$0xff]
    %v279 = vld [vmem:[#allocation4 + $0x98] sm:$0xff]
    %v280 = vld [vmem:[#allocation4 + $0xa0] sm:$0xff]
    %v281 = vld [vmem:[#allocation4 + $0xa8] sm:$0xff]
    %v282 = vld [vmem:[#allocation4 + $0xb0] sm:$0xff]
    %v283 = vld [vmem:[#allocation4 + $0xb8] sm:$0xff]
    %v284 = vld [vmem:[#allocation4 + $0xc0] sm:$0xff]
    %v285 = vld [vmem:[#allocation4 + $0xc8] sm:$0xff]
    %v286 = vld [vmem:[#allocation4 + $0xd0] sm:$0xff]
    %v287 = vld [vmem:[#allocation4 + $0xd8] sm:$0xff]
    %v288 = vld [vmem:[#allocation4 + $0xe0] sm:$0xff]
    %v289 = vld [vmem:[#allocation4 + $0xe8] sm:$0xff]
    %v290 = vld [vmem:[#allocation4 + $0xf0] sm:$0xff]
    %v291 = vld [vmem:[#allocation4 + $0xf8] sm:$0xff]
    %v292 = vld [vmem:[#allocation4 + $0x100] sm:$0xff]
    %v293 = vld [vmem:[#allocation4 + $0x108] sm:$0xff]
    %v294 = vld [vmem:[#allocation4 + $0x110] sm:$0xff]
    %v295 = vld [vmem:[#allocation4 + $0x118] sm:$0xff]
    %v296 = vld [vmem:[#allocation4 + $0x120] sm:$0xff]
    %v297 = vld [vmem:[#allocation4 + $0x128] sm:$0xff]
    %v298 = vld [vmem:[#allocation4 + $0x130] sm:$0xff]
    %v299 = vld [vmem:[#allocation4 + $0x138] sm:$0xff]
    %v300 = vld [vmem:[#allocation4 + $0x140] sm:$0xff]
    %v301 = vld [vmem:[#allocation4 + $0x148] sm:$0xff]
    %v302 = vld [vmem:[#allocation4 + $0x150] sm:$0xff]
    %v303 = vld [vmem:[#allocation4 + $0x158] sm:$0xff]
    %v304 = vld [vmem:[#allocation4 + $0x160] sm:$0xff]
    %v305 = vld [vmem:[#allocation4 + $0x168] sm:$0xff]
    %v306 = vld [vmem:[#allocation4 + $0x170] sm:$0xff]
    %v307 = vld [vmem:[#allocation4 + $0x178] sm:$0xff]
    %v308 = vld [vmem:[#allocation4 + $0x180] sm:$0xff]
    %v309 = vld [vmem:[#allocation4 + $0x188] sm:$0xff]
    %v310 = vld [vmem:[#allocation4 + $0x190] sm:$0xff]
    %v311 = vld [vmem:[#allocation4 + $0x198] sm:$0xff]
    %v312 = vld [vmem:[#allocation4 + $0x1a0] sm:$0xff]
    %v313 = vld [vmem:[#allocation4 + $0x1a8] sm:$0xff]
    %v314 = vld [vmem:[#allocation4 + $0x1b0] sm:$0xff]
    %v315 = vld [vmem:[#allocation4 + $0x1b8] sm:$0xff]
    %v316 = vld [vmem:[#allocation4 + $0x1c0] sm:$0xff]
    %v317 = vld [vmem:[#allocation4 + $0x1c8] sm:$0xff]
    %v318 = vld [vmem:[#allocation4 + $0x1d0] sm:$0xff]
    %v319 = vld [vmem:[#allocation4 + $0x1d8] sm:$0xff]
    %v320 = vld [vmem:[#allocation4 + $0x1e0] sm:$0xff]
    %v321 = vld [vmem:[#allocation4 + $0x1e8] sm:$0xff]
    %v322 = vld [vmem:[#allocation4 + $0x1f0] sm:$0xff]
    %v323 = vld [vmem:[#allocation4 + $0x1f8] sm:$0xff]
    %v324 = vld [vmem:[#allocation4 + $0x200] sm:$0xff]
    %v325 = vld [vmem:[#allocation4 + $0x208] sm:$0xff]
    %v326 = vld [vmem:[#allocation4 + $0x210] sm:$0xff]
    %v327 = vld [vmem:[#allocation4 + $0x218] sm:$0xff]
    %v328 = vld [vmem:[#allocation4 + $0x220] sm:$0xff]
    %v329 = vld [vmem:[#allocation4 + $0x228] sm:$0xff]
    %v330 = vld [vmem:[#allocation4 + $0x230] sm:$0xff]
    %v331 = vld [vmem:[#allocation4 + $0x238] sm:$0xff]
    %v332 = vld [vmem:[#allocation4 + $0x240] sm:$0xff]
    %v333 = vld [vmem:[#allocation4 + $0x248] sm:$0xff]
    %v334 = vld [vmem:[#allocation4 + $0x250] sm:$0xff]
    %v335 = vld [vmem:[#allocation4 + $0x258] sm:$0xff]
    %v336 = vld [vmem:[#allocation4 + $0x260] sm:$0xff]
    %v337 = vld [vmem:[#allocation4 + $0x268] sm:$0xff]
    %v338 = vld [vmem:[#allocation4 + $0x270] sm:$0xff]
    %v339 = vld [vmem:[#allocation4 + $0x278] sm:$0xff]
    %v340 = vld [vmem:[#allocation4 + $0x280] sm:$0xff]
    %v341 = vld [vmem:[#allocation4 + $0x288] sm:$0xff]
    %v342 = vld [vmem:[#allocation4 + $0x290] sm:$0xff]
    %v343 = vld [vmem:[#allocation4 + $0x298] sm:$0xff]
    %v344 = vld [vmem:[#allocation4 + $0x2a0] sm:$0xff]
    %v345 = vld [vmem:[#allocation4 + $0x2a8] sm:$0xff]
    %v346 = vld [vmem:[#allocation4 + $0x2b0] sm:$0xff]
    %v347 = vld [vmem:[#allocation4 + $0x2b8] sm:$0xff]
    %v348 = vld [vmem:[#allocation4 + $0x2c0] sm:$0xff]
    %v349 = vld [vmem:[#allocation4 + $0x2c8] sm:$0xff]
    %v350 = vld [vmem:[#allocation4 + $0x2d0] sm:$0xff]
    %v351 = vld [vmem:[#allocation4 + $0x2d8] sm:$0xff]
    %v352 = vld [vmem:[#allocation4 + $0x2e0] sm:$0xff]
    %v353 = vld [vmem:[#allocation4 + $0x2e8] sm:$0xff]
    %v354 = vld [vmem:[#allocation4 + $0x2f0] sm:$0xff]
    %v355 = vld [vmem:[#allocation4 + $0x2f8] sm:$0xff]
    %v356 = vld [vmem:[#allocation4 + $0x300] sm:$0xff]
    %v357 = vld [vmem:[#allocation4 + $0x308] sm:$0xff]
    %v358 = vld [vmem:[#allocation4 + $0x310] sm:$0xff]
    %v359 = vld [vmem:[#allocation4 + $0x318] sm:$0xff]
    %v360 = vld [vmem:[#allocation4 + $0x320] sm:$0xff]
    %v361 = vld [vmem:[#allocation4 + $0x328] sm:$0xff]
    %v362 = vld [vmem:[#allocation4 + $0x330] sm:$0xff]
    %v363 = vld [vmem:[#allocation4 + $0x338] sm:$0xff]
    %v364 = vld [vmem:[#allocation4 + $0x340] sm:$0xff]
    %v365 = vld [vmem:[#allocation4 + $0x348] sm:$0xff]
    %v366 = vld [vmem:[#allocation4 + $0x350] sm:$0xff]
    %v367 = vld [vmem:[#allocation4 + $0x358] sm:$0xff]
    %v368 = vld [vmem:[#allocation4 + $0x360] sm:$0xff]
    %v369 = vld [vmem:[#allocation4 + $0x368] sm:$0xff]
    %v370 = vld [vmem:[#allocation4 + $0x370] sm:$0xff]
    %v371 = vld [vmem:[#allocation4 + $0x378] sm:$0xff]
    %v372 = vld [vmem:[#allocation4 + $0x380] sm:$0xff]
    %v373 = vld [vmem:[#allocation4 + $0x388] sm:$0xff]
    %v374 = vld [vmem:[#allocation4 + $0x390] sm:$0xff]
    %v375 = vld [vmem:[#allocation4 + $0x398] sm:$0xff]
    %v376 = vld [vmem:[#allocation4 + $0x3a0] sm:$0xff]
    %v377 = vld [vmem:[#allocation4 + $0x3a8] sm:$0xff]
    %v378 = vld [vmem:[#allocation4 + $0x3b0] sm:$0xff]
    %v379 = vld [vmem:[#allocation4 + $0x3b8] sm:$0xff]
    %v380 = vld [vmem:[#allocation4 + $0x3c0] sm:$0xff]
    %v381 = vld [vmem:[#allocation4 + $0x3c8] sm:$0xff]
    %v382 = vld [vmem:[#allocation4 + $0x3d0] sm:$0xff]
    %v383 = vld [vmem:[#allocation4 + $0x3d8] sm:$0xff]
    %v384 = vld [vmem:[#allocation4 + $0x3e0] sm:$0xff]
    %v385 = vld [vmem:[#allocation4 + $0x3e8] sm:$0xff]
    %v386 = vld [vmem:[#allocation4 + $0x3f0] sm:$0xff]
    %v387 = vld [vmem:[#allocation4 + $0x3f8] sm:$0xff]
    %v516 = vunpack.c.l.b16 %v260
    %v517 = vunpack.c.h.b16 %v260
    %v518 = vunpack.c.l.b16 %v261
    %v519 = vunpack.c.h.b16 %v261
    %v520 = vunpack.c.l.b16 %v262
    %v521 = vunpack.c.h.b16 %v262
    %v522 = vunpack.c.l.b16 %v263
    %v523 = vunpack.c.h.b16 %v263
    %v524 = vunpack.c.l.b16 %v264
    %v525 = vunpack.c.h.b16 %v264
    %v526 = vunpack.c.l.b16 %v265
    %v527 = vunpack.c.h.b16 %v265
    %v528 = vunpack.c.l.b16 %v266
    %v529 = vunpack.c.h.b16 %v266
    %v530 = vunpack.c.l.b16 %v267
    %v531 = vunpack.c.h.b16 %v267
    %v532 = vunpack.c.l.b16 %v268
    %v533 = vunpack.c.h.b16 %v268
    %v534 = vunpack.c.l.b16 %v269
    %v535 = vunpack.c.h.b16 %v269
    %v536 = vunpack.c.l.b16 %v270
    %v537 = vunpack.c.h.b16 %v270
    %v538 = vunpack.c.l.b16 %v271
    %v539 = vunpack.c.h.b16 %v271
    %v540 = vunpack.c.l.b16 %v272
    %v541 = vunpack.c.h.b16 %v272
    %v542 = vunpack.c.l.b16 %v273
    %v543 = vunpack.c.h.b16 %v273
    %v544 = vunpack.c.l.b16 %v274
    %v545 = vunpack.c.h.b16 %v274
    %v546 = vunpack.c.l.b16 %v275
    %v547 = vunpack.c.h.b16 %v275
    %v548 = vunpack.c.l.b16 %v276
    %v549 = vunpack.c.h.b16 %v276
    %v550 = vunpack.c.l.b16 %v277
    %v551 = vunpack.c.h.b16 %v277
    %v552 = vunpack.c.l.b16 %v278
    %v553 = vunpack.c.h.b16 %v278
    %v554 = vunpack.c.l.b16 %v279
    %v555 = vunpack.c.h.b16 %v279
    %v556 = vunpack.c.l.b16 %v280
    %v557 = vunpack.c.h.b16 %v280
    %v558 = vunpack.c.l.b16 %v281
    %v559 = vunpack.c.h.b16 %v281
    %v560 = vunpack.c.l.b16 %v282
    %v561 = vunpack.c.h.b16 %v282
    %v562 = vunpack.c.l.b16 %v283
    %v563 = vunpack.c.h.b16 %v283
    %v564 = vunpack.c.l.b16 %v284
    %v565 = vunpack.c.h.b16 %v284
    %v566 = vunpack.c.l.b16 %v285
    %v567 = vunpack.c.h.b16 %v285
    %v568 = vunpack.c.l.b16 %v286
    %v569 = vunpack.c.h.b16 %v286
    %v570 = vunpack.c.l.b16 %v287
    %v571 = vunpack.c.h.b16 %v287
    %v572 = vunpack.c.l.b16 %v288
    %v573 = vunpack.c.h.b16 %v288
    %v574 = vunpack.c.l.b16 %v289
    %v575 = vunpack.c.h.b16 %v289
    %v576 = vunpack.c.l.b16 %v290
    %v577 = vunpack.c.h.b16 %v290
    %v578 = vunpack.c.l.b16 %v291
    %v579 = vunpack.c.h.b16 %v291
    %v580 = vunpack.c.l.b16 %v292
    %v581 = vunpack.c.h.b16 %v292
    %v582 = vunpack.c.l.b16 %v293
    %v583 = vunpack.c.h.b16 %v293
    %v584 = vunpack.c.l.b16 %v294
    %v585 = vunpack.c.h.b16 %v294
    %v586 = vunpack.c.l.b16 %v295
    %v587 = vunpack.c.h.b16 %v295
    %v588 = vunpack.c.l.b16 %v296
    %v589 = vunpack.c.h.b16 %v296
    %v590 = vunpack.c.l.b16 %v297
    %v591 = vunpack.c.h.b16 %v297
    %v592 = vunpack.c.l.b16 %v298
    %v593 = vunpack.c.h.b16 %v298
    %v594 = vunpack.c.l.b16 %v299
    %v595 = vunpack.c.h.b16 %v299
    %v596 = vunpack.c.l.b16 %v300
    %v597 = vunpack.c.h.b16 %v300
    %v598 = vunpack.c.l.b16 %v301
    %v599 = vunpack.c.h.b16 %v301
    %v600 = vunpack.c.l.b16 %v302
    %v601 = vunpack.c.h.b16 %v302
    %v602 = vunpack.c.l.b16 %v303
    %v603 = vunpack.c.h.b16 %v303
    %v604 = vunpack.c.l.b16 %v304
    %v605 = vunpack.c.h.b16 %v304
    %v606 = vunpack.c.l.b16 %v305
    %v607 = vunpack.c.h.b16 %v305
    %v608 = vunpack.c.l.b16 %v306
    %v609 = vunpack.c.h.b16 %v306
    %v610 = vunpack.c.l.b16 %v307
    %v611 = vunpack.c.h.b16 %v307
    %v612 = vunpack.c.l.b16 %v308
    %v613 = vunpack.c.h.b16 %v308
    %v614 = vunpack.c.l.b16 %v309
    %v615 = vunpack.c.h.b16 %v309
    %v616 = vunpack.c.l.b16 %v310
    %v617 = vunpack.c.h.b16 %v310
    %v618 = vunpack.c.l.b16 %v311
    %v619 = vunpack.c.h.b16 %v311
    %v620 = vunpack.c.l.b16 %v312
    %v621 = vunpack.c.h.b16 %v312
    %v622 = vunpack.c.l.b16 %v313
    %v623 = vunpack.c.h.b16 %v313
    %v624 = vunpack.c.l.b16 %v314
    %v625 = vunpack.c.h.b16 %v314
    %v626 = vunpack.c.l.b16 %v315
    %v627 = vunpack.c.h.b16 %v315
    %v628 = vunpack.c.l.b16 %v316
    %v629 = vunpack.c.h.b16 %v316
    %v630 = vunpack.c.l.b16 %v317
    %v631 = vunpack.c.h.b16 %v317
    %v632 = vunpack.c.l.b16 %v318
    %v633 = vunpack.c.h.b16 %v318
    %v634 = vunpack.c.l.b16 %v319
    %v635 = vunpack.c.h.b16 %v319
    %v636 = vunpack.c.l.b16 %v320
    %v637 = vunpack.c.h.b16 %v320
    %v638 = vunpack.c.l.b16 %v321
    %v639 = vunpack.c.h.b16 %v321
    %v640 = vunpack.c.l.b16 %v322
    %v641 = vunpack.c.h.b16 %v322
    %v642 = vunpack.c.l.b16 %v323
    %v643 = vunpack.c.h.b16 %v323
    %v644 = vunpack.c.l.b16 %v324
    %v645 = vunpack.c.h.b16 %v324
    %v646 = vunpack.c.l.b16 %v325
    %v647 = vunpack.c.h.b16 %v325
    %v648 = vunpack.c.l.b16 %v326
    %v649 = vunpack.c.h.b16 %v326
    %v650 = vunpack.c.l.b16 %v327
    %v651 = vunpack.c.h.b16 %v327
    %v652 = vunpack.c.l.b16 %v328
    %v653 = vunpack.c.h.b16 %v328
    %v654 = vunpack.c.l.b16 %v329
    %v655 = vunpack.c.h.b16 %v329
    %v656 = vunpack.c.l.b16 %v330
    %v657 = vunpack.c.h.b16 %v330
    %v658 = vunpack.c.l.b16 %v331
    %v659 = vunpack.c.h.b16 %v331
    %v660 = vunpack.c.l.b16 %v332
    %v661 = vunpack.c.h.b16 %v332
    %v662 = vunpack.c.l.b16 %v333
    %v663 = vunpack.c.h.b16 %v333
    %v664 = vunpack.c.l.b16 %v334
    %v665 = vunpack.c.h.b16 %v334
    %v666 = vunpack.c.l.b16 %v335
    %v667 = vunpack.c.h.b16 %v335
    %v668 = vunpack.c.l.b16 %v336
    %v669 = vunpack.c.h.b16 %v336
    %v670 = vunpack.c.l.b16 %v337
    %v671 = vunpack.c.h.b16 %v337
    %v672 = vunpack.c.l.b16 %v338
    %v673 = vunpack.c.h.b16 %v338
    %v674 = vunpack.c.l.b16 %v339
    %v675 = vunpack.c.h.b16 %v339
    %v676 = vunpack.c.l.b16 %v340
    %v677 = vunpack.c.h.b16 %v340
    %v678 = vunpack.c.l.b16 %v341
    %v679 = vunpack.c.h.b16 %v341
    %v680 = vunpack.c.l.b16 %v342
    %v681 = vunpack.c.h.b16 %v342
    %v682 = vunpack.c.l.b16 %v343
    %v683 = vunpack.c.h.b16 %v343
    %v684 = vunpack.c.l.b16 %v344
    %v685 = vunpack.c.h.b16 %v344
    %v686 = vunpack.c.l.b16 %v345
    %v687 = vunpack.c.h.b16 %v345
    %v688 = vunpack.c.l.b16 %v346
    %v689 = vunpack.c.h.b16 %v346
    %v690 = vunpack.c.l.b16 %v347
    %v691 = vunpack.c.h.b16 %v347
    %v692 = vunpack.c.l.b16 %v348
    %v693 = vunpack.c.h.b16 %v348
    %v694 = vunpack.c.l.b16 %v349
    %v695 = vunpack.c.h.b16 %v349
    %v696 = vunpack.c.l.b16 %v350
    %v697 = vunpack.c.h.b16 %v350
    %v698 = vunpack.c.l.b16 %v351
    %v699 = vunpack.c.h.b16 %v351
    %v700 = vunpack.c.l.b16 %v352
    %v701 = vunpack.c.h.b16 %v352
    %v702 = vunpack.c.l.b16 %v353
    %v703 = vunpack.c.h.b16 %v353
    %v704 = vunpack.c.l.b16 %v354
    %v705 = vunpack.c.h.b16 %v354
    %v706 = vunpack.c.l.b16 %v355
    %v707 = vunpack.c.h.b16 %v355
    %v708 = vunpack.c.l.b16 %v356
    %v709 = vunpack.c.h.b16 %v356
    %v710 = vunpack.c.l.b16 %v357
    %v711 = vunpack.c.h.b16 %v357
    %v712 = vunpack.c.l.b16 %v358
    %v713 = vunpack.c.h.b16 %v358
    %v714 = vunpack.c.l.b16 %v359
    %v715 = vunpack.c.h.b16 %v359
    %v716 = vunpack.c.l.b16 %v360
    %v717 = vunpack.c.h.b16 %v360
    %v718 = vunpack.c.l.b16 %v361
    %v719 = vunpack.c.h.b16 %v361
    %v720 = vunpack.c.l.b16 %v362
    %v721 = vunpack.c.h.b16 %v362
    %v722 = vunpack.c.l.b16 %v363
    %v723 = vunpack.c.h.b16 %v363
    %v724 = vunpack.c.l.b16 %v364
    %v725 = vunpack.c.h.b16 %v364
    %v726 = vunpack.c.l.b16 %v365
    %v727 = vunpack.c.h.b16 %v365
    %v728 = vunpack.c.l.b16 %v366
    %v729 = vunpack.c.h.b16 %v366
    %v730 = vunpack.c.l.b16 %v367
    %v731 = vunpack.c.h.b16 %v367
    %v732 = vunpack.c.l.b16 %v368
    %v733 = vunpack.c.h.b16 %v368
    %v734 = vunpack.c.l.b16 %v369
    %v735 = vunpack.c.h.b16 %v369
    %v736 = vunpack.c.l.b16 %v370
    %v737 = vunpack.c.h.b16 %v370
    %v738 = vunpack.c.l.b16 %v371
    %v739 = vunpack.c.h.b16 %v371
    %v740 = vunpack.c.l.b16 %v372
    %v741 = vunpack.c.h.b16 %v372
    %v742 = vunpack.c.l.b16 %v373
    %v743 = vunpack.c.h.b16 %v373
    %v744 = vunpack.c.l.b16 %v374
    %v745 = vunpack.c.h.b16 %v374
    %v746 = vunpack.c.l.b16 %v375
    %v747 = vunpack.c.h.b16 %v375
    %v748 = vunpack.c.l.b16 %v376
    %v749 = vunpack.c.h.b16 %v376
    %v750 = vunpack.c.l.b16 %v377
    %v751 = vunpack.c.h.b16 %v377
    %v752 = vunpack.c.l.b16 %v378
    %v753 = vunpack.c.h.b16 %v378
    %v754 = vunpack.c.l.b16 %v379
    %v755 = vunpack.c.h.b16 %v379
    %v756 = vunpack.c.l.b16 %v380
    %v757 = vunpack.c.h.b16 %v380
    %v758 = vunpack.c.l.b16 %v381
    %v759 = vunpack.c.h.b16 %v381
    %v760 = vunpack.c.l.b16 %v382
    %v761 = vunpack.c.h.b16 %v382
    %v762 = vunpack.c.l.b16 %v383
    %v763 = vunpack.c.h.b16 %v383
    %v764 = vunpack.c.l.b16 %v384
    %v765 = vunpack.c.h.b16 %v384
    %v766 = vunpack.c.l.b16 %v385
    %v767 = vunpack.c.h.b16 %v385
    %v768 = vunpack.c.l.b16 %v386
    %v769 = vunpack.c.h.b16 %v386
    %v770 = vunpack.c.l.b16 %v387
    %v771 = vunpack.c.h.b16 %v387
    %v772 = vpack.c.b16 %v520, %v516
    %v773 = vpack.c.b16 %v521, %v517
    %v774 = vpack.c.b16 %v522, %v518
    %v775 = vpack.c.b16 %v523, %v519
    %v776 = vpack.c.b16 %v528, %v524
    %v777 = vpack.c.b16 %v529, %v525
    %v778 = vpack.c.b16 %v530, %v526
    %v779 = vpack.c.b16 %v531, %v527
    %v780 = vpack.c.b16 %v536, %v532
    %v781 = vpack.c.b16 %v537, %v533
    %v782 = vpack.c.b16 %v538, %v534
    %v783 = vpack.c.b16 %v539, %v535
    %v784 = vpack.c.b16 %v544, %v540
    %v785 = vpack.c.b16 %v545, %v541
    %v786 = vpack.c.b16 %v546, %v542
    %v787 = vpack.c.b16 %v547, %v543
    %v788 = vpack.c.b16 %v552, %v548
    %v789 = vpack.c.b16 %v553, %v549
    %v790 = vpack.c.b16 %v554, %v550
    %v791 = vpack.c.b16 %v555, %v551
    %v792 = vpack.c.b16 %v560, %v556
    %v793 = vpack.c.b16 %v561, %v557
    %v794 = vpack.c.b16 %v562, %v558
    %v795 = vpack.c.b16 %v563, %v559
    %v796 = vpack.c.b16 %v568, %v564
    %v797 = vpack.c.b16 %v569, %v565
    %v798 = vpack.c.b16 %v570, %v566
    %v799 = vpack.c.b16 %v571, %v567
    %v800 = vpack.c.b16 %v576, %v572
    %v801 = vpack.c.b16 %v577, %v573
    %v802 = vpack.c.b16 %v578, %v574
    %v803 = vpack.c.b16 %v579, %v575
    %v804 = vpack.c.b16 %v584, %v580
    %v805 = vpack.c.b16 %v585, %v581
    %v806 = vpack.c.b16 %v586, %v582
    %v807 = vpack.c.b16 %v587, %v583
    %v808 = vpack.c.b16 %v592, %v588
    %v809 = vpack.c.b16 %v593, %v589
    %v810 = vpack.c.b16 %v594, %v590
    %v811 = vpack.c.b16 %v595, %v591
    %v812 = vpack.c.b16 %v600, %v596
    %v813 = vpack.c.b16 %v601, %v597
    %v814 = vpack.c.b16 %v602, %v598
    %v815 = vpack.c.b16 %v603, %v599
    %v816 = vpack.c.b16 %v608, %v604
    %v817 = vpack.c.b16 %v609, %v605
    %v818 = vpack.c.b16 %v610, %v606
    %v819 = vpack.c.b16 %v611, %v607
    %v820 = vpack.c.b16 %v616, %v612
    %v821 = vpack.c.b16 %v617, %v613
    %v822 = vpack.c.b16 %v618, %v614
    %v823 = vpack.c.b16 %v619, %v615
    %v824 = vpack.c.b16 %v624, %v620
    %v825 = vpack.c.b16 %v625, %v621
    %v826 = vpack.c.b16 %v626, %v622
    %v827 = vpack.c.b16 %v627, %v623
    %v828 = vpack.c.b16 %v632, %v628
    %v829 = vpack.c.b16 %v633, %v629
    %v830 = vpack.c.b16 %v634, %v630
    %v831 = vpack.c.b16 %v635, %v631
    %v832 = vpack.c.b16 %v640, %v636
    %v833 = vpack.c.b16 %v641, %v637
    %v834 = vpack.c.b16 %v642, %v638
    %v835 = vpack.c.b16 %v643, %v639
    %v836 = vpack.c.b16 %v648, %v644
    %v837 = vpack.c.b16 %v649, %v645
    %v838 = vpack.c.b16 %v650, %v646
    %v839 = vpack.c.b16 %v651, %v647
    %v840 = vpack.c.b16 %v656, %v652
    %v841 = vpack.c.b16 %v657, %v653
    %v842 = vpack.c.b16 %v658, %v654
    %v843 = vpack.c.b16 %v659, %v655
    %v844 = vpack.c.b16 %v664, %v660
    %v845 = vpack.c.b16 %v665, %v661
    %v846 = vpack.c.b16 %v666, %v662
    %v847 = vpack.c.b16 %v667, %v663
    %v848 = vpack.c.b16 %v672, %v668
    %v849 = vpack.c.b16 %v673, %v669
    %v850 = vpack.c.b16 %v674, %v670
    %v851 = vpack.c.b16 %v675, %v671
    %v852 = vpack.c.b16 %v680, %v676
    %v853 = vpack.c.b16 %v681, %v677
    %v854 = vpack.c.b16 %v682, %v678
    %v855 = vpack.c.b16 %v683, %v679
    %v856 = vpack.c.b16 %v688, %v684
    %v857 = vpack.c.b16 %v689, %v685
    %v858 = vpack.c.b16 %v690, %v686
    %v859 = vpack.c.b16 %v691, %v687
    %v860 = vpack.c.b16 %v696, %v692
    %v861 = vpack.c.b16 %v697, %v693
    %v862 = vpack.c.b16 %v698, %v694
    %v863 = vpack.c.b16 %v699, %v695
    %v864 = vpack.c.b16 %v704, %v700
    %v865 = vpack.c.b16 %v705, %v701
    %v866 = vpack.c.b16 %v706, %v702
    %v867 = vpack.c.b16 %v707, %v703
    %v868 = vpack.c.b16 %v712, %v708
    %v869 = vpack.c.b16 %v713, %v709
    %v870 = vpack.c.b16 %v714, %v710
    %v871 = vpack.c.b16 %v715, %v711
    %v872 = vpack.c.b16 %v720, %v716
    %v873 = vpack.c.b16 %v721, %v717
    %v874 = vpack.c.b16 %v722, %v718
    %v875 = vpack.c.b16 %v723, %v719
    %v876 = vpack.c.b16 %v728, %v724
    %v877 = vpack.c.b16 %v729, %v725
    %v878 = vpack.c.b16 %v730, %v726
    %v879 = vpack.c.b16 %v731, %v727
    %v880 = vpack.c.b16 %v736, %v732
    %v881 = vpack.c.b16 %v737, %v733
    %v882 = vpack.c.b16 %v738, %v734
    %v883 = vpack.c.b16 %v739, %v735
    %v884 = vpack.c.b16 %v744, %v740
    %v885 = vpack.c.b16 %v745, %v741
    %v886 = vpack.c.b16 %v746, %v742
    %v887 = vpack.c.b16 %v747, %v743
    %v888 = vpack.c.b16 %v752, %v748
    %v889 = vpack.c.b16 %v753, %v749
    %v890 = vpack.c.b16 %v754, %v750
    %v891 = vpack.c.b16 %v755, %v751
    %v892 = vpack.c.b16 %v760, %v756
    %v893 = vpack.c.b16 %v761, %v757
    %v894 = vpack.c.b16 %v762, %v758
    %v895 = vpack.c.b16 %v763, %v759
    %v896 = vpack.c.b16 %v768, %v764
    %v897 = vpack.c.b16 %v769, %v765
    %v898 = vpack.c.b16 %v770, %v766
    %v899 = vpack.c.b16 %v771, %v767
    %1028 = vmatpush.bf16.msra.mxu0 %v800
    %1029 = vmatpush.bf16.msra.mxu0 %v796
    %1030 = vmatpush.bf16.msra.mxu0 %v792
    %1031 = vmatpush.bf16.msra.mxu0 %v788
    %1032 = vmatpush.bf16.msra.mxu0 %v784
    %1033 = vmatpush.bf16.msra.mxu0 %v780
    %1034 = vmatpush.bf16.msra.mxu0 %v776
    %1035 = vmatpush.bf16.msra.mxu0 %v772
    %1036 = vmatmul.bf16.gmra.mxu0 %v256
    %v1037 = vpop.f32.mrf.mxu0
    %v1038 = vadd.f32 0.0, %v1037
    %v1039 = vpop.f32.mrf.mxu0
    %1040 = vdwg.mxu0
    %1041 = vmatpush.bf16.msra.mxu0 %v832
    %1042 = vmatpush.bf16.msra.mxu0 %v828
    %1043 = vmatpush.bf16.msra.mxu0 %v824
    %1044 = vmatpush.bf16.msra.mxu0 %v820
    %1045 = vmatpush.bf16.msra.mxu0 %v816
    %1046 = vmatpush.bf16.msra.mxu0 %v812
    %1047 = vmatpush.bf16.msra.mxu0 %v808
    %1048 = vmatpush.bf16.msra.mxu0 %v804
    %1049 = vmatmul.bf16.gmra.mxu0 %v257
    %v1050 = vpop.f32.mrf.mxu0
    %v1051 = vadd.f32 %v1038, %v1050
    %v1052 = vpop.f32.mrf.mxu0
    %1053 = vdwg.mxu0
    %1054 = vmatpush.bf16.msra.mxu0 %v864
    %1055 = vmatpush.bf16.msra.mxu0 %v860
    %1056 = vmatpush.bf16.msra.mxu0 %v856
    %1057 = vmatpush.bf16.msra.mxu0 %v852
    %1058 = vmatpush.bf16.msra.mxu0 %v848
    %1059 = vmatpush.bf16.msra.mxu0 %v844
    %1060 = vmatpush.bf16.msra.mxu0 %v840
    %1061 = vmatpush.bf16.msra.mxu0 %v836
    %1062 = vmatmul.bf16.gmra.mxu0 %v258
    %v1063 = vpop.f32.mrf.mxu0
    %v1064 = vadd.f32 %v1051, %v1063
    %v1065 = vpop.f32.mrf.mxu0
    %1066 = vdwg.mxu0
    %1067 = vmatpush.bf16.msra.mxu0 %v896
    %1068 = vmatpush.bf16.msra.mxu0 %v892
    %1069 = vmatpush.bf16.msra.mxu0 %v888
    %1070 = vmatpush.bf16.msra.mxu0 %v884
    %1071 = vmatpush.bf16.msra.mxu0 %v880
    %1072 = vmatpush.bf16.msra.mxu0 %v876
    %1073 = vmatpush.bf16.msra.mxu0 %v872
    %1074 = vmatpush.bf16.msra.mxu0 %v868
    %1075 = vmatmul.bf16.gmra.mxu0 %v259
    %v1076 = vpop.f32.mrf.mxu0
    %v1077 = vadd.f32 %v1064, %v1076
    %v1078 = vpop.f32.mrf.mxu0
    %1079 = vdwg.mxu0
    %1080 = vmatpush.bf16.msra.mxu0 %v801
    %1081 = vmatpush.bf16.msra.mxu0 %v797
    %1082 = vmatpush.bf16.msra.mxu0 %v793
    %1083 = vmatpush.bf16.msra.mxu0 %v789
    %1084 = vmatpush.bf16.msra.mxu0 %v785
    %1085 = vmatpush.bf16.msra.mxu0 %v781
    %1086 = vmatpush.bf16.msra.mxu0 %v777
    %1087 = vmatpush.bf16.msra.mxu0 %v773
    %1088 = vmatmul.bf16.gmra.mxu0 %v256
    %v1089 = vpop.f32.mrf.mxu0
    %v1090 = vadd.f32 0.0, %v1089
    %v1091 = vpop.f32.mrf.mxu0
    %1092 = vdwg.mxu0
    %1093 = vmatpush.bf16.msra.mxu0 %v833
    %1094 = vmatpush.bf16.msra.mxu0 %v829
    %1095 = vmatpush.bf16.msra.mxu0 %v825
    %1096 = vmatpush.bf16.msra.mxu0 %v821
    %1097 = vmatpush.bf16.msra.mxu0 %v817
    %1098 = vmatpush.bf16.msra.mxu0 %v813
    %1099 = vmatpush.bf16.msra.mxu0 %v809
    %1100 = vmatpush.bf16.msra.mxu0 %v805
    %1101 = vmatmul.bf16.gmra.mxu0 %v257
    %v1102 = vpop.f32.mrf.mxu0
    %v1103 = vadd.f32 %v1090, %v1102
    %v1104 = vpop.f32.mrf.mxu0
    %1105 = vdwg.mxu0
    %1106 = vmatpush.bf16.msra.mxu0 %v865
    %1107 = vmatpush.bf16.msra.mxu0 %v861
    %1108 = vmatpush.bf16.msra.mxu0 %v857
    %1109 = vmatpush.bf16.msra.mxu0 %v853
    %1110 = vmatpush.bf16.msra.mxu0 %v849
    %1111 = vmatpush.bf16.msra.mxu0 %v845
    %1112 = vmatpush.bf16.msra.mxu0 %v841
    %1113 = vmatpush.bf16.msra.mxu0 %v837
    %1114 = vmatmul.bf16.gmra.mxu0 %v258
    %v1115 = vpop.f32.mrf.mxu0
    %v1116 = vadd.f32 %v1103, %v1115
    %v1117 = vpop.f32.mrf.mxu0
    %1118 = vdwg.mxu0
    %1119 = vmatpush.bf16.msra.mxu0 %v897
    %1120 = vmatpush.bf16.msra.mxu0 %v893
    %1121 = vmatpush.bf16.msra.mxu0 %v889
    %1122 = vmatpush.bf16.msra.mxu0 %v885
    %1123 = vmatpush.bf16.msra.mxu0 %v881
    %1124 = vmatpush.bf16.msra.mxu0 %v877
    %1125 = vmatpush.bf16.msra.mxu0 %v873
    %1126 = vmatpush.bf16.msra.mxu0 %v869
    %1127 = vmatmul.bf16.gmra.mxu0 %v259
    %v1128 = vpop.f32.mrf.mxu0
    %v1129 = vadd.f32 %v1116, %v1128
    %v1130 = vpop.f32.mrf.mxu0
    %1131 = vdwg.mxu0
    %1132 = vmatpush.bf16.msra.mxu0 %v802
    %1133 = vmatpush.bf16.msra.mxu0 %v798
    %1134 = vmatpush.bf16.msra.mxu0 %v794
    %1135 = vmatpush.bf16.msra.mxu0 %v790
    %1136 = vmatpush.bf16.msra.mxu0 %v786
    %1137 = vmatpush.bf16.msra.mxu0 %v782
    %1138 = vmatpush.bf16.msra.mxu0 %v778
    %1139 = vmatpush.bf16.msra.mxu0 %v774
    %1140 = vmatmul.bf16.gmra.mxu0 %v256
    %v1141 = vpop.f32.mrf.mxu0
    %v1142 = vadd.f32 0.0, %v1141
    %v1143 = vpop.f32.mrf.mxu0
    %1144 = vdwg.mxu0
    %1145 = vmatpush.bf16.msra.mxu0 %v834
    %1146 = vmatpush.bf16.msra.mxu0 %v830
    %1147 = vmatpush.bf16.msra.mxu0 %v826
    %1148 = vmatpush.bf16.msra.mxu0 %v822
    %1149 = vmatpush.bf16.msra.mxu0 %v818
    %1150 = vmatpush.bf16.msra.mxu0 %v814
    %1151 = vmatpush.bf16.msra.mxu0 %v810
    %1152 = vmatpush.bf16.msra.mxu0 %v806
    %1153 = vmatmul.bf16.gmra.mxu0 %v257
    %v1154 = vpop.f32.mrf.mxu0
    %v1155 = vadd.f32 %v1142, %v1154
    %v1156 = vpop.f32.mrf.mxu0
    %1157 = vdwg.mxu0
    %1158 = vmatpush.bf16.msra.mxu0 %v866
    %1159 = vmatpush.bf16.msra.mxu0 %v862
    %1160 = vmatpush.bf16.msra.mxu0 %v858
    %1161 = vmatpush.bf16.msra.mxu0 %v854
    %1162 = vmatpush.bf16.msra.mxu0 %v850
    %1163 = vmatpush.bf16.msra.mxu0 %v846
    %1164 = vmatpush.bf16.msra.mxu0 %v842
    %1165 = vmatpush.bf16.msra.mxu0 %v838
    %1166 = vmatmul.bf16.gmra.mxu0 %v258
    %v1167 = vpop.f32.mrf.mxu0
    %v1168 = vadd.f32 %v1155, %v1167
    %v1169 = vpop.f32.mrf.mxu0
    %1170 = vdwg.mxu0
    %1171 = vmatpush.bf16.msra.mxu0 %v898
    %1172 = vmatpush.bf16.msra.mxu0 %v894
    %1173 = vmatpush.bf16.msra.mxu0 %v890
    %1174 = vmatpush.bf16.msra.mxu0 %v886
    %1175 = vmatpush.bf16.msra.mxu0 %v882
    %1176 = vmatpush.bf16.msra.mxu0 %v878
    %1177 = vmatpush.bf16.msra.mxu0 %v874
    %1178 = vmatpush.bf16.msra.mxu0 %v870
    %1179 = vmatmul.bf16.gmra.mxu0 %v259
    %v1180 = vpop.f32.mrf.mxu0
    %v1181 = vadd.f32 %v1168, %v1180
    %v1182 = vpop.f32.mrf.mxu0
    %1183 = vdwg.mxu0
    %1184 = vmatpush.bf16.msra.mxu0 %v803
    %1185 = vmatpush.bf16.msra.mxu0 %v799
    %1186 = vmatpush.bf16.msra.mxu0 %v795
    %1187 = vmatpush.bf16.msra.mxu0 %v791
    %1188 = vmatpush.bf16.msra.mxu0 %v787
    %1189 = vmatpush.bf16.msra.mxu0 %v783
    %1190 = vmatpush.bf16.msra.mxu0 %v779
    %1191 = vmatpush.bf16.msra.mxu0 %v775
    %1192 = vmatmul.bf16.gmra.mxu0 %v256
    %v1193 = vpop.f32.mrf.mxu0
    %v1194 = vadd.f32 0.0, %v1193
    %v1195 = vpop.f32.mrf.mxu0
    %1196 = vdwg.mxu0
    %1197 = vmatpush.bf16.msra.mxu0 %v835
    %1198 = vmatpush.bf16.msra.mxu0 %v831
    %1199 = vmatpush.bf16.msra.mxu0 %v827
    %1200 = vmatpush.bf16.msra.mxu0 %v823
    %1201 = vmatpush.bf16.msra.mxu0 %v819
    %1202 = vmatpush.bf16.msra.mxu0 %v815
    %1203 = vmatpush.bf16.msra.mxu0 %v811
    %1204 = vmatpush.bf16.msra.mxu0 %v807
    %1205 = vmatmul.bf16.gmra.mxu0 %v257
    %v1206 = vpop.f32.mrf.mxu0
    %v1207 = vadd.f32 %v1194, %v1206
    %v1208 = vpop.f32.mrf.mxu0
    %1209 = vdwg.mxu0
    %1210 = vmatpush.bf16.msra.mxu0 %v867
    %1211 = vmatpush.bf16.msra.mxu0 %v863
    %1212 = vmatpush.bf16.msra.mxu0 %v859
    %1213 = vmatpush.bf16.msra.mxu0 %v855
    %1214 = vmatpush.bf16.msra.mxu0 %v851
    %1215 = vmatpush.bf16.msra.mxu0 %v847
    %1216 = vmatpush.bf16.msra.mxu0 %v843
    %1217 = vmatpush.bf16.msra.mxu0 %v839
    %1218 = vmatmul.bf16.gmra.mxu0 %v258
    %v1219 = vpop.f32.mrf.mxu0
    %v1220 = vadd.f32 %v1207, %v1219
    %v1221 = vpop.f32.mrf.mxu0
    %1222 = vdwg.mxu0
    %1223 = vmatpush.bf16.msra.mxu0 %v899
    %1224 = vmatpush.bf16.msra.mxu0 %v895
    %1225 = vmatpush.bf16.msra.mxu0 %v891
    %1226 = vmatpush.bf16.msra.mxu0 %v887
    %1227 = vmatpush.bf16.msra.mxu0 %v883
    %1228 = vmatpush.bf16.msra.mxu0 %v879
    %1229 = vmatpush.bf16.msra.mxu0 %v875
    %1230 = vmatpush.bf16.msra.mxu0 %v871
    %1231 = vmatmul.bf16.gmra.mxu0 %v259
    %v1232 = vpop.f32.mrf.mxu0
    %v1233 = vadd.f32 %v1220, %v1232
    %v1234 = vpop.f32.mrf.mxu0
    %1235 = vdwg.mxu0
    %v1236 = vld [vmem:[%s5] sm:$0xf]
    %v1238 = vperm.slane %v1236, 0
    %v1239 = vperm.slane %v1236, 1
    %v1240 = vperm.slane %v1236, 2
    %v1241 = vperm.slane %v1236, 3
    %v1246 = vmul.f32 %v1077, %v1238
    %v1247 = vmul.f32 %v1129, %v1239
    %v1248 = vmul.f32 %v1181, %v1240
    %v1249 = vmul.f32 %v1233, %v1241
    %v1250 = vld [vmem:[%s6] sm:$0xf]
    %v1252 = vperm.slane %v1250, 0
    %v1253 = vperm.slane %v1250, 1
    %v1254 = vperm.slane %v1250, 2
    %v1255 = vperm.slane %v1250, 3
    %v1260 = vadd.f32 %v1246, %v1252
    %v1261 = vadd.f32 %v1247, %v1253
    %v1262 = vadd.f32 %v1248, %v1254
    %v1263 = vadd.f32 %v1249, %v1255
    %v1264 = vmax.f32 %v1260, 0.0
    %v1265 = vmax.f32 %v1261, 0.0
    %v1266 = vmax.f32 %v1262, 0.0
    %v1267 = vmax.f32 %v1263, 0.0
    %v1268 = vpack.c.bf16 %v1264, %v1264
    %v1269 = vpack.c.bf16 %v1265, %v1265
    %v1270 = vpack.c.bf16 %v1266, %v1266
    %v1271 = vpack.c.bf16 %v1267, %v1267
    %v1272 = vld [vmem:[#allocation6] sm:$0xff]
    %v1273 = vld [vmem:[#allocation6 + $0x8] sm:$0xff]
    %v1274 = vld [vmem:[#allocation6 + $0x10] sm:$0xff]
    %v1275 = vld [vmem:[#allocation6 + $0x18] sm:$0xff]
    %v1276 = vld [vmem:[#allocation6 + $0x20] sm:$0xff]
    %v1277 = vld [vmem:[#allocation6 + $0x28] sm:$0xff]
    %v1278 = vld [vmem:[#allocation6 + $0x30] sm:$0xff]
    %v1279 = vld [vmem:[#allocation6 + $0x38] sm:$0xff]
    %v1280 = vld [vmem:[#allocation6 + $0x40] sm:$0xff]
    %v1281 = vld [vmem:[#allocation6 + $0x48] sm:$0xff]
    %v1282 = vld [vmem:[#allocation6 + $0x50] sm:$0xff]
    %v1283 = vld [vmem:[#allocation6 + $0x58] sm:$0xff]
    %v1284 = vld [vmem:[#allocation6 + $0x60] sm:$0xff]
    %v1285 = vld [vmem:[#allocation6 + $0x68] sm:$0xff]
    %v1286 = vld [vmem:[#allocation6 + $0x70] sm:$0xff]
    %v1287 = vld [vmem:[#allocation6 + $0x78] sm:$0xff]
    %v1288 = vld [vmem:[#allocation6 + $0x80] sm:$0xff]
    %v1289 = vld [vmem:[#allocation6 + $0x88] sm:$0xff]
    %v1290 = vld [vmem:[#allocation6 + $0x90] sm:$0xff]
    %v1291 = vld [vmem:[#allocation6 + $0x98] sm:$0xff]
    %v1292 = vld [vmem:[#allocation6 + $0xa0] sm:$0xff]
    %v1293 = vld [vmem:[#allocation6 + $0xa8] sm:$0xff]
    %v1294 = vld [vmem:[#allocation6 + $0xb0] sm:$0xff]
    %v1295 = vld [vmem:[#allocation6 + $0xb8] sm:$0xff]
    %v1296 = vld [vmem:[#allocation6 + $0xc0] sm:$0xff]
    %v1297 = vld [vmem:[#allocation6 + $0xc8] sm:$0xff]
    %v1298 = vld [vmem:[#allocation6 + $0xd0] sm:$0xff]
    %v1299 = vld [vmem:[#allocation6 + $0xd8] sm:$0xff]
    %v1300 = vld [vmem:[#allocation6 + $0xe0] sm:$0xff]
    %v1301 = vld [vmem:[#allocation6 + $0xe8] sm:$0xff]
    %v1302 = vld [vmem:[#allocation6 + $0xf0] sm:$0xff]
    %v1303 = vld [vmem:[#allocation6 + $0xf8] sm:$0xff]
    %v1304 = vld [vmem:[#allocation6 + $0x100] sm:$0xff]
    %v1305 = vld [vmem:[#allocation6 + $0x108] sm:$0xff]
    %v1306 = vld [vmem:[#allocation6 + $0x110] sm:$0xff]
    %v1307 = vld [vmem:[#allocation6 + $0x118] sm:$0xff]
    %v1308 = vld [vmem:[#allocation6 + $0x120] sm:$0xff]
    %v1309 = vld [vmem:[#allocation6 + $0x128] sm:$0xff]
    %v1310 = vld [vmem:[#allocation6 + $0x130] sm:$0xff]
    %v1311 = vld [vmem:[#allocation6 + $0x138] sm:$0xff]
    %v1312 = vld [vmem:[#allocation6 + $0x140] sm:$0xff]
    %v1313 = vld [vmem:[#allocation6 + $0x148] sm:$0xff]
    %v1314 = vld [vmem:[#allocation6 + $0x150] sm:$0xff]
    %v1315 = vld [vmem:[#allocation6 + $0x158] sm:$0xff]
    %v1316 = vld [vmem:[#allocation6 + $0x160] sm:$0xff]
    %v1317 = vld [vmem:[#allocation6 + $0x168] sm:$0xff]
    %v1318 = vld [vmem:[#allocation6 + $0x170] sm:$0xff]
    %v1319 = vld [vmem:[#allocation6 + $0x178] sm:$0xff]
    %v1320 = vld [vmem:[#allocation6 + $0x180] sm:$0xff]
    %v1321 = vld [vmem:[#allocation6 + $0x188] sm:$0xff]
    %v1322 = vld [vmem:[#allocation6 + $0x190] sm:$0xff]
    %v1323 = vld [vmem:[#allocation6 + $0x198] sm:$0xff]
    %v1324 = vld [vmem:[#allocation6 + $0x1a0] sm:$0xff]
    %v1325 = vld [vmem:[#allocation6 + $0x1a8] sm:$0xff]
    %v1326 = vld [vmem:[#allocation6 + $0x1b0] sm:$0xff]
    %v1327 = vld [vmem:[#allocation6 + $0x1b8] sm:$0xff]
    %v1328 = vld [vmem:[#allocation6 + $0x1c0] sm:$0xff]
    %v1329 = vld [vmem:[#allocation6 + $0x1c8] sm:$0xff]
    %v1330 = vld [vmem:[#allocation6 + $0x1d0] sm:$0xff]
    %v1331 = vld [vmem:[#allocation6 + $0x1d8] sm:$0xff]
    %v1332 = vld [vmem:[#allocation6 + $0x1e0] sm:$0xff]
    %v1333 = vld [vmem:[#allocation6 + $0x1e8] sm:$0xff]
    %v1334 = vld [vmem:[#allocation6 + $0x1f0] sm:$0xff]
    %v1335 = vld [vmem:[#allocation6 + $0x1f8] sm:$0xff]
    %v1400 = vunpack.c.l.b16 %v1272
    %v1401 = vunpack.c.h.b16 %v1272
    %v1402 = vunpack.c.l.b16 %v1273
    %v1403 = vunpack.c.h.b16 %v1273
    %v1404 = vunpack.c.l.b16 %v1274
    %v1405 = vunpack.c.h.b16 %v1274
    %v1406 = vunpack.c.l.b16 %v1275
    %v1407 = vunpack.c.h.b16 %v1275
    %v1408 = vunpack.c.l.b16 %v1276
    %v1409 = vunpack.c.h.b16 %v1276
    %v1410 = vunpack.c.l.b16 %v1277
    %v1411 = vunpack.c.h.b16 %v1277
    %v1412 = vunpack.c.l.b16 %v1278
    %v1413 = vunpack.c.h.b16 %v1278
    %v1414 = vunpack.c.l.b16 %v1279
    %v1415 = vunpack.c.h.b16 %v1279
    %v1416 = vunpack.c.l.b16 %v1280
    %v1417 = vunpack.c.h.b16 %v1280
    %v1418 = vunpack.c.l.b16 %v1281
    %v1419 = vunpack.c.h.b16 %v1281
    %v1420 = vunpack.c.l.b16 %v1282
    %v1421 = vunpack.c.h.b16 %v1282
    %v1422 = vunpack.c.l.b16 %v1283
    %v1423 = vunpack.c.h.b16 %v1283
    %v1424 = vunpack.c.l.b16 %v1284
    %v1425 = vunpack.c.h.b16 %v1284
    %v1426 = vunpack.c.l.b16 %v1285
    %v1427 = vunpack.c.h.b16 %v1285
    %v1428 = vunpack.c.l.b16 %v1286
    %v1429 = vunpack.c.h.b16 %v1286
    %v1430 = vunpack.c.l.b16 %v1287
    %v1431 = vunpack.c.h.b16 %v1287
    %v1432 = vunpack.c.l.b16 %v1288
    %v1433 = vunpack.c.h.b16 %v1288
    %v1434 = vunpack.c.l.b16 %v1289
    %v1435 = vunpack.c.h.b16 %v1289
    %v1436 = vunpack.c.l.b16 %v1290
    %v1437 = vunpack.c.h.b16 %v1290
    %v1438 = vunpack.c.l.b16 %v1291
    %v1439 = vunpack.c.h.b16 %v1291
    %v1440 = vunpack.c.l.b16 %v1292
    %v1441 = vunpack.c.h.b16 %v1292
    %v1442 = vunpack.c.l.b16 %v1293
    %v1443 = vunpack.c.h.b16 %v1293
    %v1444 = vunpack.c.l.b16 %v1294
    %v1445 = vunpack.c.h.b16 %v1294
    %v1446 = vunpack.c.l.b16 %v1295
    %v1447 = vunpack.c.h.b16 %v1295
    %v1448 = vunpack.c.l.b16 %v1296
    %v1449 = vunpack.c.h.b16 %v1296
    %v1450 = vunpack.c.l.b16 %v1297
    %v1451 = vunpack.c.h.b16 %v1297
    %v1452 = vunpack.c.l.b16 %v1298
    %v1453 = vunpack.c.h.b16 %v1298
    %v1454 = vunpack.c.l.b16 %v1299
    %v1455 = vunpack.c.h.b16 %v1299
    %v1456 = vunpack.c.l.b16 %v1300
    %v1457 = vunpack.c.h.b16 %v1300
    %v1458 = vunpack.c.l.b16 %v1301
    %v1459 = vunpack.c.h.b16 %v1301
    %v1460 = vunpack.c.l.b16 %v1302
    %v1461 = vunpack.c.h.b16 %v1302
    %v1462 = vunpack.c.l.b16 %v1303
    %v1463 = vunpack.c.h.b16 %v1303
    %v1464 = vunpack.c.l.b16 %v1304
    %v1465 = vunpack.c.h.b16 %v1304
    %v1466 = vunpack.c.l.b16 %v1305
    %v1467 = vunpack.c.h.b16 %v1305
    %v1468 = vunpack.c.l.b16 %v1306
    %v1469 = vunpack.c.h.b16 %v1306
    %v1470 = vunpack.c.l.b16 %v1307
    %v1471 = vunpack.c.h.b16 %v1307
    %v1472 = vunpack.c.l.b16 %v1308
    %v1473 = vunpack.c.h.b16 %v1308
    %v1474 = vunpack.c.l.b16 %v1309
    %v1475 = vunpack.c.h.b16 %v1309
    %v1476 = vunpack.c.l.b16 %v1310
    %v1477 = vunpack.c.h.b16 %v1310
    %v1478 = vunpack.c.l.b16 %v1311
    %v1479 = vunpack.c.h.b16 %v1311
    %v1480 = vunpack.c.l.b16 %v1312
    %v1481 = vunpack.c.h.b16 %v1312
    %v1482 = vunpack.c.l.b16 %v1313
    %v1483 = vunpack.c.h.b16 %v1313
    %v1484 = vunpack.c.l.b16 %v1314
    %v1485 = vunpack.c.h.b16 %v1314
    %v1486 = vunpack.c.l.b16 %v1315
    %v1487 = vunpack.c.h.b16 %v1315
    %v1488 = vunpack.c.l.b16 %v1316
    %v1489 = vunpack.c.h.b16 %v1316
    %v1490 = vunpack.c.l.b16 %v1317
    %v1491 = vunpack.c.h.b16 %v1317
    %v1492 = vunpack.c.l.b16 %v1318
    %v1493 = vunpack.c.h.b16 %v1318
    %v1494 = vunpack.c.l.b16 %v1319
    %v1495 = vunpack.c.h.b16 %v1319
    %v1496 = vunpack.c.l.b16 %v1320
    %v1497 = vunpack.c.h.b16 %v1320
    %v1498 = vunpack.c.l.b16 %v1321
    %v1499 = vunpack.c.h.b16 %v1321
    %v1500 = vunpack.c.l.b16 %v1322
    %v1501 = vunpack.c.h.b16 %v1322
    %v1502 = vunpack.c.l.b16 %v1323
    %v1503 = vunpack.c.h.b16 %v1323
    %v1504 = vunpack.c.l.b16 %v1324
    %v1505 = vunpack.c.h.b16 %v1324
    %v1506 = vunpack.c.l.b16 %v1325
    %v1507 = vunpack.c.h.b16 %v1325
    %v1508 = vunpack.c.l.b16 %v1326
    %v1509 = vunpack.c.h.b16 %v1326
    %v1510 = vunpack.c.l.b16 %v1327
    %v1511 = vunpack.c.h.b16 %v1327
    %v1512 = vunpack.c.l.b16 %v1328
    %v1513 = vunpack.c.h.b16 %v1328
    %v1514 = vunpack.c.l.b16 %v1329
    %v1515 = vunpack.c.h.b16 %v1329
    %v1516 = vunpack.c.l.b16 %v1330
    %v1517 = vunpack.c.h.b16 %v1330
    %v1518 = vunpack.c.l.b16 %v1331
    %v1519 = vunpack.c.h.b16 %v1331
    %v1520 = vunpack.c.l.b16 %v1332
    %v1521 = vunpack.c.h.b16 %v1332
    %v1522 = vunpack.c.l.b16 %v1333
    %v1523 = vunpack.c.h.b16 %v1333
    %v1524 = vunpack.c.l.b16 %v1334
    %v1525 = vunpack.c.h.b16 %v1334
    %v1526 = vunpack.c.l.b16 %v1335
    %v1527 = vunpack.c.h.b16 %v1335
    %v1528 = vpack.c.b16 %v1402, %v1400
    %v1529 = vpack.c.b16 %v1403, %v1401
    %v1530 = vpack.c.b16 %v1406, %v1404
    %v1531 = vpack.c.b16 %v1407, %v1405
    %v1532 = vpack.c.b16 %v1410, %v1408
    %v1533 = vpack.c.b16 %v1411, %v1409
    %v1534 = vpack.c.b16 %v1414, %v1412
    %v1535 = vpack.c.b16 %v1415, %v1413
    %v1536 = vpack.c.b16 %v1418, %v1416
    %v1537 = vpack.c.b16 %v1419, %v1417
    %v1538 = vpack.c.b16 %v1422, %v1420
    %v1539 = vpack.c.b16 %v1423, %v1421
    %v1540 = vpack.c.b16 %v1426, %v1424
    %v1541 = vpack.c.b16 %v1427, %v1425
    %v1542 = vpack.c.b16 %v1430, %v1428
    %v1543 = vpack.c.b16 %v1431, %v1429
    %v1544 = vpack.c.b16 %v1434, %v1432
    %v1545 = vpack.c.b16 %v1435, %v1433
    %v1546 = vpack.c.b16 %v1438, %v1436
    %v1547 = vpack.c.b16 %v1439, %v1437
    %v1548 = vpack.c.b16 %v1442, %v1440
    %v1549 = vpack.c.b16 %v1443, %v1441
    %v1550 = vpack.c.b16 %v1446, %v1444
    %v1551 = vpack.c.b16 %v1447, %v1445
    %v1552 = vpack.c.b16 %v1450, %v1448
    %v1553 = vpack.c.b16 %v1451, %v1449
    %v1554 = vpack.c.b16 %v1454, %v1452
    %v1555 = vpack.c.b16 %v1455, %v1453
    %v1556 = vpack.c.b16 %v1458, %v1456
    %v1557 = vpack.c.b16 %v1459, %v1457
    %v1558 = vpack.c.b16 %v1462, %v1460
    %v1559 = vpack.c.b16 %v1463, %v1461
    %v1560 = vpack.c.b16 %v1466, %v1464
    %v1561 = vpack.c.b16 %v1467, %v1465
    %v1562 = vpack.c.b16 %v1470, %v1468
    %v1563 = vpack.c.b16 %v1471, %v1469
    %v1564 = vpack.c.b16 %v1474, %v1472
    %v1565 = vpack.c.b16 %v1475, %v1473
    %v1566 = vpack.c.b16 %v1478, %v1476
    %v1567 = vpack.c.b16 %v1479, %v1477
    %v1568 = vpack.c.b16 %v1482, %v1480
    %v1569 = vpack.c.b16 %v1483, %v1481
    %v1570 = vpack.c.b16 %v1486, %v1484
    %v1571 = vpack.c.b16 %v1487, %v1485
    %v1572 = vpack.c.b16 %v1490, %v1488
    %v1573 = vpack.c.b16 %v1491, %v1489
    %v1574 = vpack.c.b16 %v1494, %v1492
    %v1575 = vpack.c.b16 %v1495, %v1493
    %v1576 = vpack.c.b16 %v1498, %v1496
    %v1577 = vpack.c.b16 %v1499, %v1497
    %v1578 = vpack.c.b16 %v1502, %v1500
    %v1579 = vpack.c.b16 %v1503, %v1501
    %v1580 = vpack.c.b16 %v1506, %v1504
    %v1581 = vpack.c.b16 %v1507, %v1505
    %v1582 = vpack.c.b16 %v1510, %v1508
    %v1583 = vpack.c.b16 %v1511, %v1509
    %v1584 = vpack.c.b16 %v1514, %v1512
    %v1585 = vpack.c.b16 %v1515, %v1513
    %v1586 = vpack.c.b16 %v1518, %v1516
    %v1587 = vpack.c.b16 %v1519, %v1517
    %v1588 = vpack.c.b16 %v1522, %v1520
    %v1589 = vpack.c.b16 %v1523, %v1521
    %v1590 = vpack.c.b16 %v1526, %v1524
    %v1591 = vpack.c.b16 %v1527, %v1525
    %1656 = vmatpush.bf16.msra.mxu0 %v1542
    %1657 = vmatpush.bf16.msra.mxu0 %v1540
    %1658 = vmatpush.bf16.msra.mxu0 %v1538
    %1659 = vmatpush.bf16.msra.mxu0 %v1536
    %1660 = vmatpush.bf16.msra.mxu0 %v1534
    %1661 = vmatpush.bf16.msra.mxu0 %v1532
    %1662 = vmatpush.bf16.msra.mxu0 %v1530
    %1663 = vmatpush.bf16.msra.mxu0 %v1528
    %1664 = vmatmul.bf16.gmra.mxu0 %v1268
    %v1665 = vpop.f32.mrf.mxu0
    %v1666 = vadd.f32 0.0, %v1665
    %v1667 = vpop.f32.mrf.mxu0
    %1668 = vdwg.mxu0
    %1669 = vmatpush.bf16.msra.mxu0 %v1558
    %1670 = vmatpush.bf16.msra.mxu0 %v1556
    %1671 = vmatpush.bf16.msra.mxu0 %v1554
    %1672 = vmatpush.bf16.msra.mxu0 %v1552
    %1673 = vmatpush.bf16.msra.mxu0 %v1550
    %1674 = vmatpush.bf16.msra.mxu0 %v1548
    %1675 = vmatpush.bf16.msra.mxu0 %v1546
    %1676 = vmatpush.bf16.msra.mxu0 %v1544
    %1677 = vmatmul.bf16.gmra.mxu0 %v1269
    %v1678 = vpop.f32.mrf.mxu0
    %v1679 = vadd.f32 %v1666, %v1678
    %v1680 = vpop.f32.mrf.mxu0
    %1681 = vdwg.mxu0
    %1682 = vmatpush.bf16.msra.mxu0 %v1574
    %1683 = vmatpush.bf16.msra.mxu0 %v1572
    %1684 = vmatpush.bf16.msra.mxu0 %v1570
    %1685 = vmatpush.bf16.msra.mxu0 %v1568
    %1686 = vmatpush.bf16.msra.mxu0 %v1566
    %1687 = vmatpush.bf16.msra.mxu0 %v1564
    %1688 = vmatpush.bf16.msra.mxu0 %v1562
    %1689 = vmatpush.bf16.msra.mxu0 %v1560
    %1690 = vmatmul.bf16.gmra.mxu0 %v1270
    %v1691 = vpop.f32.mrf.mxu0
    %v1692 = vadd.f32 %v1679, %v1691
    %v1693 = vpop.f32.mrf.mxu0
    %1694 = vdwg.mxu0
    %1695 = vmatpush.bf16.msra.mxu0 %v1590
    %1696 = vmatpush.bf16.msra.mxu0 %v1588
    %1697 = vmatpush.bf16.msra.mxu0 %v1586
    %1698 = vmatpush.bf16.msra.mxu0 %v1584
    %1699 = vmatpush.bf16.msra.mxu0 %v1582
    %1700 = vmatpush.bf16.msra.mxu0 %v1580
    %1701 = vmatpush.bf16.msra.mxu0 %v1578
    %1702 = vmatpush.bf16.msra.mxu0 %v1576
    %1703 = vmatmul.bf16.gmra.mxu0 %v1271
    %v1704 = vpop.f32.mrf.mxu0
    %v1705 = vadd.f32 %v1692, %v1704
    %v1706 = vpop.f32.mrf.mxu0
    %1707 = vdwg.mxu0
    %1708 = vmatpush.bf16.msra.mxu0 %v1543
    %1709 = vmatpush.bf16.msra.mxu0 %v1541
    %1710 = vmatpush.bf16.msra.mxu0 %v1539
    %1711 = vmatpush.bf16.msra.mxu0 %v1537
    %1712 = vmatpush.bf16.msra.mxu0 %v1535
    %1713 = vmatpush.bf16.msra.mxu0 %v1533
    %1714 = vmatpush.bf16.msra.mxu0 %v1531
    %1715 = vmatpush.bf16.msra.mxu0 %v1529
    %1716 = vmatmul.bf16.gmra.mxu0 %v1268
    %v1717 = vpop.f32.mrf.mxu0
    %v1718 = vadd.f32 0.0, %v1717
    %v1719 = vpop.f32.mrf.mxu0
    %1720 = vdwg.mxu0
    %1721 = vmatpush.bf16.msra.mxu0 %v1559
    %1722 = vmatpush.bf16.msra.mxu0 %v1557
    %1723 = vmatpush.bf16.msra.mxu0 %v1555
    %1724 = vmatpush.bf16.msra.mxu0 %v1553
    %1725 = vmatpush.bf16.msra.mxu0 %v1551
    %1726 = vmatpush.bf16.msra.mxu0 %v1549
    %1727 = vmatpush.bf16.msra.mxu0 %v1547
    %1728 = vmatpush.bf16.msra.mxu0 %v1545
    %1729 = vmatmul.bf16.gmra.mxu0 %v1269
    %v1730 = vpop.f32.mrf.mxu0
    %v1731 = vadd.f32 %v1718, %v1730
    %v1732 = vpop.f32.mrf.mxu0
    %1733 = vdwg.mxu0
    %1734 = vmatpush.bf16.msra.mxu0 %v1575
    %1735 = vmatpush.bf16.msra.mxu0 %v1573
    %1736 = vmatpush.bf16.msra.mxu0 %v1571
    %1737 = vmatpush.bf16.msra.mxu0 %v1569
    %1738 = vmatpush.bf16.msra.mxu0 %v1567
    %1739 = vmatpush.bf16.msra.mxu0 %v1565
    %1740 = vmatpush.bf16.msra.mxu0 %v1563
    %1741 = vmatpush.bf16.msra.mxu0 %v1561
    %1742 = vmatmul.bf16.gmra.mxu0 %v1270
    %v1743 = vpop.f32.mrf.mxu0
    %v1744 = vadd.f32 %v1731, %v1743
    %v1745 = vpop.f32.mrf.mxu0
    %1746 = vdwg.mxu0
    %1747 = vmatpush.bf16.msra.mxu0 %v1591
    %1748 = vmatpush.bf16.msra.mxu0 %v1589
    %1749 = vmatpush.bf16.msra.mxu0 %v1587
    %1750 = vmatpush.bf16.msra.mxu0 %v1585
    %1751 = vmatpush.bf16.msra.mxu0 %v1583
    %1752 = vmatpush.bf16.msra.mxu0 %v1581
    %1753 = vmatpush.bf16.msra.mxu0 %v1579
    %1754 = vmatpush.bf16.msra.mxu0 %v1577
    %1755 = vmatmul.bf16.gmra.mxu0 %v1271
    %v1756 = vpop.f32.mrf.mxu0
    %v1757 = vadd.f32 %v1744, %v1756
    %v1758 = vpop.f32.mrf.mxu0
    %1759 = vdwg.mxu0
    %v1760 = vld [vmem:[%s8] sm:$0x3]
    %v1762 = vperm.slane %v1760, 0
    %v1763 = vperm.slane %v1760, 1
    %v1766 = vmul.f32 %v1705, %v1762
    %v1767 = vmul.f32 %v1757, %v1763
    %v1768 = vld [vmem:[%s9] sm:$0x3]
    %v1770 = vperm.slane %v1768, 0
    %v1771 = vperm.slane %v1768, 1
    %v1774 = vadd.f32 %v1766, %v1770
    %v1775 = vadd.f32 %v1767, %v1771
    %v1776 = vmax.f32 %v1774, 0.0
    %v1777 = vmax.f32 %v1775, 0.0
    %v1778 = vpack.c.bf16 %v1776, %v1776
    %v1779 = vpack.c.bf16 %v1777, %v1777
    %v1780 = vld [vmem:[#allocation7] sm:$0xf]
    %v1781 = vld [vmem:[#allocation7 + $0x4] sm:$0xf]
    %v1782 = vld [vmem:[#allocation7 + $0x8] sm:$0xf]
    %v1783 = vld [vmem:[#allocation7 + $0xc] sm:$0xf]
    %v1784 = vld [vmem:[#allocation7 + $0x10] sm:$0xf]
    %v1785 = vld [vmem:[#allocation7 + $0x14] sm:$0xf]
    %v1786 = vld [vmem:[#allocation7 + $0x18] sm:$0xf]
    %v1787 = vld [vmem:[#allocation7 + $0x1c] sm:$0xf]
    %v1788 = vld [vmem:[#allocation7 + $0x20] sm:$0xf]
    %v1789 = vld [vmem:[#allocation7 + $0x24] sm:$0xf]
    %v1790 = vld [vmem:[#allocation7 + $0x28] sm:$0xf]
    %v1791 = vld [vmem:[#allocation7 + $0x2c] sm:$0xf]
    %v1792 = vld [vmem:[#allocation7 + $0x30] sm:$0xf]
    %v1793 = vld [vmem:[#allocation7 + $0x34] sm:$0xf]
    %v1794 = vld [vmem:[#allocation7 + $0x38] sm:$0xf]
    %v1795 = vld [vmem:[#allocation7 + $0x3c] sm:$0xf]
    %v1796 = vld [vmem:[#allocation7 + $0x40] sm:$0xf]
    %v1797 = vld [vmem:[#allocation7 + $0x44] sm:$0xf]
    %v1798 = vld [vmem:[#allocation7 + $0x48] sm:$0xf]
    %v1799 = vld [vmem:[#allocation7 + $0x4c] sm:$0xf]
    %v1800 = vld [vmem:[#allocation7 + $0x50] sm:$0xf]
    %v1801 = vld [vmem:[#allocation7 + $0x54] sm:$0xf]
    %v1802 = vld [vmem:[#allocation7 + $0x58] sm:$0xf]
    %v1803 = vld [vmem:[#allocation7 + $0x5c] sm:$0xf]
    %v1804 = vld [vmem:[#allocation7 + $0x60] sm:$0xf]
    %v1805 = vld [vmem:[#allocation7 + $0x64] sm:$0xf]
    %v1806 = vld [vmem:[#allocation7 + $0x68] sm:$0xf]
    %v1807 = vld [vmem:[#allocation7 + $0x6c] sm:$0xf]
    %v1808 = vld [vmem:[#allocation7 + $0x70] sm:$0xf]
    %v1809 = vld [vmem:[#allocation7 + $0x74] sm:$0xf]
    %v1810 = vld [vmem:[#allocation7 + $0x78] sm:$0xf]
    %v1811 = vld [vmem:[#allocation7 + $0x7c] sm:$0xf]
    %v1844 = vunpack.c.l.b16 %v1780
    %v1845 = vunpack.c.l.b16 %v1781
    %v1846 = vunpack.c.l.b16 %v1782
    %v1847 = vunpack.c.l.b16 %v1783
    %v1848 = vunpack.c.l.b16 %v1784
    %v1849 = vunpack.c.l.b16 %v1785
    %v1850 = vunpack.c.l.b16 %v1786
    %v1851 = vunpack.c.l.b16 %v1787
    %v1852 = vunpack.c.l.b16 %v1788
    %v1853 = vunpack.c.l.b16 %v1789
    %v1854 = vunpack.c.l.b16 %v1790
    %v1855 = vunpack.c.l.b16 %v1791
    %v1856 = vunpack.c.l.b16 %v1792
    %v1857 = vunpack.c.l.b16 %v1793
    %v1858 = vunpack.c.l.b16 %v1794
    %v1859 = vunpack.c.l.b16 %v1795
    %v1860 = vunpack.c.l.b16 %v1796
    %v1861 = vunpack.c.l.b16 %v1797
    %v1862 = vunpack.c.l.b16 %v1798
    %v1863 = vunpack.c.l.b16 %v1799
    %v1864 = vunpack.c.l.b16 %v1800
    %v1865 = vunpack.c.l.b16 %v1801
    %v1866 = vunpack.c.l.b16 %v1802
    %v1867 = vunpack.c.l.b16 %v1803
    %v1868 = vunpack.c.l.b16 %v1804
    %v1869 = vunpack.c.l.b16 %v1805
    %v1870 = vunpack.c.l.b16 %v1806
    %v1871 = vunpack.c.l.b16 %v1807
    %v1872 = vunpack.c.l.b16 %v1808
    %v1873 = vunpack.c.l.b16 %v1809
    %v1874 = vunpack.c.l.b16 %v1810
    %v1875 = vunpack.c.l.b16 %v1811
    %v1876 = vpack.c.b16 %v1845, %v1844
    %v1877 = vpack.c.b16 %v1847, %v1846
    %v1878 = vpack.c.b16 %v1849, %v1848
    %v1879 = vpack.c.b16 %v1851, %v1850
    %v1880 = vpack.c.b16 %v1853, %v1852
    %v1881 = vpack.c.b16 %v1855, %v1854
    %v1882 = vpack.c.b16 %v1857, %v1856
    %v1883 = vpack.c.b16 %v1859, %v1858
    %v1884 = vpack.c.b16 %v1861, %v1860
    %v1885 = vpack.c.b16 %v1863, %v1862
    %v1886 = vpack.c.b16 %v1865, %v1864
    %v1887 = vpack.c.b16 %v1867, %v1866
    %v1888 = vpack.c.b16 %v1869, %v1868
    %v1889 = vpack.c.b16 %v1871, %v1870
    %v1890 = vpack.c.b16 %v1873, %v1872
    %v1891 = vpack.c.b16 %v1875, %v1874
    %1908 = vmatpush.bf16.msra.mxu0 %v1883
    %1909 = vmatpush.bf16.msra.mxu0 %v1882
    %1910 = vmatpush.bf16.msra.mxu0 %v1881
    %1911 = vmatpush.bf16.msra.mxu0 %v1880
    %1912 = vmatpush.bf16.msra.mxu0 %v1879
    %1913 = vmatpush.bf16.msra.mxu0 %v1878
    %1914 = vmatpush.bf16.msra.mxu0 %v1877
    %1915 = vmatpush.bf16.msra.mxu0 %v1876
    %1916 = vmatmul.bf16.gmra.mxu0 %v1778
    %v1917 = vpop.f32.mrf.mxu0
    %v1918 = vadd.f32 0.0, %v1917
    %v1919 = vpop.f32.mrf.mxu0
    %1920 = vdwg.mxu0
    %1921 = vmatpush.bf16.msra.mxu0 %v1891
    %1922 = vmatpush.bf16.msra.mxu0 %v1890
    %1923 = vmatpush.bf16.msra.mxu0 %v1889
    %1924 = vmatpush.bf16.msra.mxu0 %v1888
    %1925 = vmatpush.bf16.msra.mxu0 %v1887
    %1926 = vmatpush.bf16.msra.mxu0 %v1886
    %1927 = vmatpush.bf16.msra.mxu0 %v1885
    %1928 = vmatpush.bf16.msra.mxu0 %v1884
    %1929 = vmatmul.bf16.gmra.mxu0 %v1779
    %v1930 = vpop.f32.mrf.mxu0
    %v1931 = vadd.f32 %v1918, %v1930
    %v1932 = vpop.f32.mrf.mxu0
    %1933 = vdwg.mxu0
    %v1934 = vld [vmem:[%s11] sm:$0x1]
    %v1936 = vperm.slane %v1934, 0
    %v1938 = vmul.f32 %v1931, %v1936
    %v1939 = vld [vmem:[%s12] sm:$0x1]
    %v1941 = vperm.slane %v1939, 0
    %v1943 = vadd.f32 %v1938, %v1941
    %v1944 = vmax.f32 %v1943, 0.0
    %v1945 = vpack.c.bf16 %v1944, %v1944
    %v1946 = vld [vmem:[#allocation9] sm:$0xf]
    %v1947 = vld [vmem:[#allocation9 + $0x4] sm:$0xf]
    %v1948 = vld [vmem:[#allocation9 + $0x8] sm:$0xf]
    %v1949 = vld [vmem:[#allocation9 + $0xc] sm:$0xf]
    %v1950 = vld [vmem:[#allocation9 + $0x10] sm:$0xf]
    %v1951 = vld [vmem:[#allocation9 + $0x14] sm:$0xf]
    %v1952 = vld [vmem:[#allocation9 + $0x18] sm:$0xf]
    %v1953 = vld [vmem:[#allocation9 + $0x1c] sm:$0xf]
    %v1954 = vld [vmem:[#allocation9 + $0x20] sm:$0xf]
    %v1955 = vld [vmem:[#allocation9 + $0x24] sm:$0xf]
    %v1956 = vld [vmem:[#allocation9 + $0x28] sm:$0xf]
    %v1957 = vld [vmem:[#allocation9 + $0x2c] sm:$0xf]
    %v1958 = vld [vmem:[#allocation9 + $0x30] sm:$0xf]
    %v1959 = vld [vmem:[#allocation9 + $0x34] sm:$0xf]
    %v1960 = vld [vmem:[#allocation9 + $0x38] sm:$0xf]
    %v1961 = vld [vmem:[#allocation9 + $0x3c] sm:$0xf]
    %v1962 = vld [vmem:[%s14] sm:$0x1]
    %v1964 = vperm.slane %v1962, 0
    %v1982 = vunpack.c.l.b16 %v1946
    %v1983 = vunpack.c.l.b16 %v1947
    %v1984 = vunpack.c.l.b16 %v1948
    %v1985 = vunpack.c.l.b16 %v1949
    %v1986 = vunpack.c.l.b16 %v1950
    %v1987 = vunpack.c.l.b16 %v1951
    %v1988 = vunpack.c.l.b16 %v1952
    %v1989 = vunpack.c.l.b16 %v1953
    %v1990 = vunpack.c.l.b16 %v1954
    %v1991 = vunpack.c.l.b16 %v1955
    %v1992 = vunpack.c.l.b16 %v1956
    %v1993 = vunpack.c.l.b16 %v1957
    %v1994 = vunpack.c.l.b16 %v1958
    %v1995 = vunpack.c.l.b16 %v1959
    %v1996 = vunpack.c.l.b16 %v1960
    %v1997 = vunpack.c.l.b16 %v1961
    %v1998 = vpack.c.b16 %v1983, %v1982
    %v1999 = vpack.c.b16 %v1985, %v1984
    %v2000 = vpack.c.b16 %v1987, %v1986
    %v2001 = vpack.c.b16 %v1989, %v1988
    %v2002 = vpack.c.b16 %v1991, %v1990
    %v2003 = vpack.c.b16 %v1993, %v1992
    %v2004 = vpack.c.b16 %v1995, %v1994
    %v2005 = vpack.c.b16 %v1997, %v1996
    %2014 = vmatpush.bf16.msra.mxu0 %v2005
    %2015 = vmatpush.bf16.msra.mxu0 %v2004
    %2016 = vmatpush.bf16.msra.mxu0 %v2003
    %2017 = vmatpush.bf16.msra.mxu0 %v2002
    %2018 = vmatpush.bf16.msra.mxu0 %v2001
    %2019 = vmatpush.bf16.msra.mxu0 %v2000
    %2020 = vmatpush.bf16.msra.mxu0 %v1999
    %2021 = vmatpush.bf16.msra.mxu0 %v1998
    %2022 = vmatmul.bf16.gmra.mxu0 %v1945
    %v2023 = vpop.f32.mrf.mxu0
    %v2024 = vadd.f32 %v1964, %v2023
    %v2025 = vpop.f32.mrf.mxu0
    %2026 = vdwg.mxu0
    %2027 = vst [vmem:[%s15] sm:$0xff] %v2024
    // Predicated region
    $region82: #{deepnn_forward.1} parent=1 // pred_check
      _
    $region83: #{deepnn_forward.1} parent=1 // pred_check_branch
      %2029 = sbr.rel (0) target = $region85
    $region84: #{deepnn_forward.1} parent=1 // pred_region
      _
    $region85: #{deepnn_forward.1} parent=1 // pred_fallthru
      _
    // Predicated region
    $region86: #{deepnn_forward.1} parent=1 // pred_check
      _
    $region87: #{deepnn_forward.1} parent=1 // pred_check_branch
      %2031 = sbr.rel (0) target = $region89
    $region88: #{deepnn_forward.1} parent=1 // pred_region
      _
    $region89: #{deepnn_forward.1} parent=1 // pred_fallthru
      _
    %2032 = vsyncpa [#allocation3], 1
    %2033 = vsyncpa [#allocation5], 1
    %2034 = vsyncpa [#allocation8], 1

</llo_original>
